<compile_context>
chip_gen: v5e
topology: v5e:2x2
jax: 0.10.0
libtpu: 0.0.40
codegen_flags: <defaults>
</compile_context>

<pallas_src>
import functools

import jax
import jax.numpy as jnp
from jax import lax
from jax.experimental import pallas as pl
from jax.experimental.pallas import tpu as pltpu


# ----------------------------------------------------------------------------
# Kernel 1: fused (ctx, asp) length-masked bidirectional LSTM
#   grid = (2,)  ->  grid step 0: context, grid step 1: aspect (time-padded)
#   x_ref   : (T*Bp, E)   bf16   rows ordered t*Bp + b (time-major)
#   len_ref : (Bp, 1)     int32  (0 for padded batch rows)
#   wi_ref  : (E, 8H)     bf16   gate cols [i_f i_b f_f f_b o_f o_b g_f g_b]
#   wh_ref  : (2H, 8H)    bf16   block-structured (fwd rows hit fwd cols only)
#   b_ref   : (1, 8H)     f32
#   out_ref : (Bp, T*2H)  bf16   row b = [h(t=0) | h(t=1) | ... ], h = [fwd|bwd]
# ----------------------------------------------------------------------------
def bilstm_kernel(x_ref, len_ref, wi_ref, wh_ref, b_ref, out_ref):
    Bp = len_ref.shape[0]
    T = x_ref.shape[0] // Bp
    D, G = wh_ref.shape          # D = 2H, G = 8H
    H = D // 2

    # ---- hoisted input projection: ONE (T*Bp, E) @ (E, 8H) bf16 MXU matmul ----
    gx_all = (jnp.dot(x_ref[...], wi_ref[...],
                      preferred_element_type=jnp.float32) + b_ref[...])  # (T*Bp, G)

    # lane masks: which gate columns / state lanes belong to the forward pass
    col_g = lax.broadcasted_iota(jnp.int32, (1, G), 1)
    fwd_col = (col_g % D) < H                               # (1, G) bool
    col_d = lax.broadcasted_iota(jnp.int32, (1, D), 1)
    fwd_half = col_d < H                                    # (1, D) bool

    lens = len_ref[...]                                     # (Bp, 1) int32

    # ---- pre-gather per-step input gates & validity masks (off the serial path)
    # step s: forward direction consumes time s, backward consumes time T-1-s.
    gx_steps = [jnp.where(fwd_col,
                          gx_all[s * Bp:(s + 1) * Bp, :],
                          gx_all[(T - 1 - s) * Bp:(T - s) * Bp, :])
                for s in range(T)]                          # T x (Bp, G)
    m_steps = [(jnp.where(fwd_half, s, T - 1 - s) < lens).astype(jnp.float32)
               for s in range(T)]                           # T x (Bp, D)

    wh = wh_ref[...]                                        # (D, G) bf16
    h = jnp.zeros((Bp, D), jnp.float32)                     # [fwd | bwd] lanes
    c = jnp.zeros((Bp, D), jnp.float32)
    outs = []

    # ---- interleaved fwd+bwd recurrence, fully unrolled (T small & static) ----
    # TODO(synk): for production T (~128) switch to lax.fori_loop(unroll=2..4)
    # with VMEM scratch for h/c/gates and a T-chunked input projection so the
    # f32 gx buffer never exceeds v7x's 64 MiB VMEM.
    for s in range(T):
        # ONE (Bp, 2H) @ (2H, 8H) matmul -> both directions' recurrent gates
        gh = jnp.dot(h.astype(jnp.bfloat16), wh,
                     preferred_element_type=jnp.float32)    # (Bp, G)
        gates = gx_steps[s] + gh
        sg = jax.nn.sigmoid(gates[:, 0:3 * D])              # i | f | o, one EUP pass
        i_g = sg[:, 0:D]
        f_g = sg[:, D:2 * D]
        o_g = sg[:, 2 * D:3 * D]
        g_g = jnp.tanh(gates[:, 3 * D:4 * D])
        c_new = f_g * c + i_g * g_g
        h_new = o_g * jnp.tanh(c_new)
        m = m_steps[s]
        c = c + m * (c_new - c)                             # freeze state past length
        h = h + m * (h_new - h)
        outs.append(m * h_new)                              # pad_packed_sequence zeros

    # ---- assemble batch-major (Bp, T*2H) and do ONE lane-dense bulk store ----
    # output at time t: fwd half produced at step t, bwd half at step T-1-t.
    rows = [jnp.where(fwd_half, outs[t], outs[T - 1 - t]) for t in range(T)]
    out_ref[...] = jnp.concatenate(rows, axis=1).astype(out_ref.dtype)


def fused_bilstm(x_st, len_st, wi_st, wh_st, b_st):
    """x_st: (2, T*Bp, E) bf16, len_st: (2, Bp, 1) i32 -> (2, Bp, T*2H) bf16."""
    n_in, TB, E = x_st.shape
    Bp = len_st.shape[1]
    T = TB // Bp
    D = wh_st.shape[1]        # 2H
    G = wh_st.shape[2]        # 8H
    return pl.pallas_call(
        bilstm_kernel,
        out_shape=jax.ShapeDtypeStruct((n_in, Bp, T * D), jnp.bfloat16),
        grid=(n_in,),
        in_specs=[
            pl.BlockSpec((None, TB, E), lambda i: (i, 0, 0)),
            pl.BlockSpec((None, Bp, 1), lambda i: (i, 0, 0)),
            pl.BlockSpec((None, E, G), lambda i: (i, 0, 0)),
            pl.BlockSpec((None, D, G), lambda i: (i, 0, 0)),
            pl.BlockSpec((None, 1, G), lambda i: (i, 0, 0)),
        ],
        out_specs=pl.BlockSpec((None, Bp, T * D), lambda i: (i, 0, 0)),
        # "parallel" lets v7x shard the two independent LSTM passes over 2 TCs.
        compiler_params=pltpu.CompilerParams(
            dimension_semantics=("parallel",),
            vmem_limit_bytes=32 * 1024 * 1024),
    )(x_st, len_st, wi_st, wh_st, b_st)


# ----------------------------------------------------------------------------
# Kernel 2: AOA attention + dense head (batch-gridded, bf16 inputs)
#   lstm_ref: (2, bb, Tc, D) bf16 -- slot 0 = context, slot 1 = aspect (padded)
# ----------------------------------------------------------------------------
def aoa_kernel(lstm_ref, w_ref, b_ref, out_ref, *, ta):
    ctx = lstm_ref[0]                          # (bb, Tc, D) bf16
    asp = lstm_ref[1, :, 0:ta, :]              # (bb, Ta, D) -- drop padded steps

    # interaction matrix both ways (MXU is idle; avoids an XLU transpose)
    inter = jnp.einsum('btd,bsd->bts', ctx, asp,
                       preferred_element_type=jnp.float32)   # (bb, Tc, Ta)
    inter_t = jnp.einsum('bsd,btd->bst', asp, ctx,
                         preferred_element_type=jnp.float32) # (bb, Ta, Tc)

    # beta = softmax over aspect positions (lane axis)
    e_b = jnp.exp(inter - jnp.max(inter, axis=2, keepdims=True))
    beta = e_b * pl.reciprocal(jnp.sum(e_b, axis=2, keepdims=True), approx=True)

    # alpha (held transposed) = softmax over context positions (lane axis)
    e_a = jnp.exp(inter_t - jnp.max(inter_t, axis=2, keepdims=True))
    alpha_t = e_a * pl.reciprocal(jnp.sum(e_a, axis=2, keepdims=True), approx=True)

    beta_avg = jnp.mean(beta, axis=1)                            # (bb, Ta)
    gamma = jnp.sum(alpha_t * beta_avg[:, :, None],
                    axis=1, keepdims=True)                       # (bb, 1, Tc)

    # weighted sum over context positions on the MXU
    weighted = jnp.einsum('bqt,btd->bqd', gamma.astype(jnp.bfloat16), ctx,
                          preferred_element_type=jnp.float32)[:, 0, :]  # (bb, D)

    out_ref[...] = (jnp.dot(weighted, w_ref[...],
                            preferred_element_type=jnp.float32) + b_ref[...])


def aoa_dense(lstm_out, w, b, *, ta):
    n_in, Bp, Tc, D = lstm_out.shape
    P = w.shape[1]
    bb = min(8, Bp)   # batch tile; keeps VMEM bounded on v7x at production sizes
    return pl.pallas_call(
        functools.partial(aoa_kernel, ta=ta),
        out_shape=jax.ShapeDtypeStruct((Bp, P), jnp.float32),
        grid=(Bp // bb,),
        in_specs=[
            pl.BlockSpec((n_in, bb, Tc, D), lambda i: (0, i, 0, 0)),
            pl.BlockSpec((D, P), lambda i: (0, 0)),
            pl.BlockSpec((1, P), lambda i: (0, 0)),
        ],
        out_specs=pl.BlockSpec((bb, P), lambda i: (i, 0)),
        compiler_params=pltpu.CompilerParams(
            dimension_semantics=("parallel",),
            vmem_limit_bytes=32 * 1024 * 1024),
    )(lstm_out, w, b.reshape(1, P))


# ----------------------------------------------------------------------------
# Full AOA_BERT forward
# ----------------------------------------------------------------------------
def aoa_bert_forward(params, text_indices, aspect_indices):
    B, Tc = text_indices.shape
    Ta = aspect_indices.shape[1]
    E = params['embed_table'].shape[1]
    D = params['lstm_wh'].shape[1]            # 2H

    # pad batch to a sublane multiple so every kernel row slice is 8-aligned
    Bp = ((B + 7) // 8) * 8
    pad_b = Bp - B

    ctx_len = jnp.sum(text_indices != 0, axis=1).astype(jnp.int32)
    asp_len = jnp.sum(aspect_indices != 0, axis=1).astype(jnp.int32)

    text_p = jnp.pad(text_indices, ((0, pad_b), (0, 0)))
    asp_p = jnp.pad(aspect_indices, ((0, pad_b), (0, Tc - Ta)))   # pad aspect time
    ctx_len_p = jnp.pad(ctx_len, (0, pad_b))
    asp_len_p = jnp.pad(asp_len, (0, pad_b))

    # TODO(synk): stand-in for the BERT encoder's last_hidden_state.
    # Gather time-major directly (transpose the tiny index matrix, not activations).
    ctx_emb = params['embed_table'][text_p.T]       # (Tc, Bp, E)
    asp_emb = params['embed_table'][asp_p.T]        # (Tc, Bp, E)

    x_st = jnp.stack([ctx_emb.reshape(Tc * Bp, E),
                      asp_emb.reshape(Tc * Bp, E)], axis=0).astype(jnp.bfloat16)
    len_st = jnp.stack([ctx_len_p, asp_len_p], axis=0).reshape(2, Bp, 1)

    lstm_flat = fused_bilstm(x_st, len_st, params['lstm_wi'],
                             params['lstm_wh'], params['lstm_b'])  # (2, Bp, Tc*D) bf16
    lstm_out = lstm_flat.reshape(2, Bp, Tc, D)      # free row-major view

    logits = aoa_dense(lstm_out, params['dense_w'], params['dense_b'], ta=Ta)
    return {'logits': logits[:B]}


def init_params(key, vocab, embed_dim, hidden_dim, polarities_dim):
    H = hidden_dim
    ks = jax.random.split(key, 5)

    def lstm_block(k):
        """Pack one bidirectional LSTM into the MXU-friendly interleaved layout.

        Gate blocks along the 8H axis are ordered [i, f, o, g] (sigmoid gates
        contiguous, tanh gate last); within each 2H gate block the forward
        direction occupies lanes [0:H] and the backward direction [H:2H].
        Wh is block-structured so one (B, 2H) @ (2H, 8H) matmul produces both
        directions' recurrent gates without a discarded half / row-select.
        """
        kk = jax.random.split(k, 6)
        wi_f = 0.1 * jax.random.normal(kk[0], (embed_dim, 4, H), jnp.float32)
        wi_b = 0.1 * jax.random.normal(kk[1], (embed_dim, 4, H), jnp.float32)
        wh_f = 0.1 * jax.random.normal(kk[2], (H, 4, H), jnp.float32)
        wh_b = 0.1 * jax.random.normal(kk[3], (H, 4, H), jnp.float32)
        b_f = 0.1 * jax.random.normal(kk[4], (4, H), jnp.float32)
        b_b = 0.1 * jax.random.normal(kk[5], (4, H), jnp.float32)

        wi = jnp.stack([wi_f, wi_b], axis=2).reshape(embed_dim, 8 * H)
        zeros = jnp.zeros_like(wh_f)
        wh_top = jnp.stack([wh_f, zeros], axis=2).reshape(H, 8 * H)  # fwd hidden rows
        wh_bot = jnp.stack([zeros, wh_b], axis=2).reshape(H, 8 * H)  # bwd hidden rows
        wh = jnp.concatenate([wh_top, wh_bot], axis=0)               # (2H, 8H)
        b = jnp.stack([b_f, b_b], axis=1).reshape(1, 8 * H)
        return wi, wh, b

    wi_c, wh_c, b_c = lstm_block(ks[1])
    wi_a, wh_a, b_a = lstm_block(ks[2])

    return dict(
        embed_table=0.1 * jax.random.normal(ks[0], (vocab, embed_dim), jnp.float32),
        lstm_wi=jnp.stack([wi_c, wi_a], axis=0).astype(jnp.bfloat16),   # (2, E, 8H)
        lstm_wh=jnp.stack([wh_c, wh_a], axis=0).astype(jnp.bfloat16),   # (2, 2H, 8H)
        lstm_b=jnp.stack([b_c, b_a], axis=0),                           # (2, 1, 8H) f32
        dense_w=0.1 * jax.random.normal(ks[3], (2 * H, polarities_dim), jnp.float32),
        dense_b=0.1 * jax.random.normal(ks[4], (polarities_dim,), jnp.float32),
    )


if __name__ == "__main__":
    B, Tc, Ta = 2, 8, 6
    vocab, embed_dim, hidden_dim, polarities_dim = 30, 32, 16, 3

    key = jax.random.PRNGKey(0)
    k_param, k_txt, k_asp = jax.random.split(key, 3)

    params = init_params(k_param, vocab, embed_dim, hidden_dim, polarities_dim)

    # deterministic padded token sequences (0 == pad)
    text_indices = jax.random.randint(k_txt, (B, Tc), 1, vocab, dtype=jnp.int32)
    ctx_lengths = jnp.array([8, 5], jnp.int32)
    text_indices = jnp.where(jnp.arange(Tc)[None, :] < ctx_lengths[:, None],
                             text_indices, 0)

    aspect_indices = jax.random.randint(k_asp, (B, Ta), 1, vocab, dtype=jnp.int32)
    asp_lengths = jnp.array([3, 6], jnp.int32)
    aspect_indices = jnp.where(jnp.arange(Ta)[None, :] < asp_lengths[:, None],
                               aspect_indices, 0)

    fwd = jax.jit(aoa_bert_forward)
    out = fwd(params, text_indices, aspect_indices)
    logits = jax.block_until_ready(out['logits'])
    assert logits.shape == (B, polarities_dim)
    print("KERNEL_OK")
</pallas_src>

<mosaic_0001>
module attributes {stable_mosaic.version = 11 : i64} {
  func.func @bilstm_kernel(%arg0: i32, %arg1: memref<1x64x32xbf16, #tpu.memory_space<vmem>>, %arg2: memref<1x8x1xi32, #tpu.memory_space<vmem>>, %arg3: memref<1x32x128xbf16, #tpu.memory_space<vmem>>, %arg4: memref<1x32x128xbf16, #tpu.memory_space<vmem>>, %arg5: memref<1x1x128xf32, #tpu.memory_space<vmem>>, %arg6: memref<1x8x256xbf16, #tpu.memory_space<vmem>>) attributes {dimension_semantics = [#tpu.dimension_semantics<parallel>], iteration_bounds = array<i64: 2>, scalar_prefetch = 0 : i64, scratch_operands = 0 : i64, tpu.core_type = #tpu.core_type<tc>, window_params = [{transform_indices = @transform_0, window_bounds = array<i64: 1, 64, 32>}, {transform_indices = @transform_1, window_bounds = array<i64: 1, 8, 1>}, {transform_indices = @transform_2, window_bounds = array<i64: 1, 32, 128>}, {transform_indices = @transform_3, window_bounds = array<i64: 1, 32, 128>}, {transform_indices = @transform_4, window_bounds = array<i64: 1, 1, 128>}, {transform_indices = @transform_5, window_bounds = array<i64: 1, 8, 256>}]} {
    %c0 = arith.constant 0 : index
    %c0_0 = arith.constant 0 : index
    %c0_1 = arith.constant 0 : index
    %0 = vector.load %arg1[%c0, %c0_0, %c0_1] : memref<1x64x32xbf16, #tpu.memory_space<vmem>>, vector<1x64x32xbf16>
    %1 = vector.shape_cast %0 : vector<1x64x32xbf16> to vector<64x32xbf16>
    %c0_2 = arith.constant 0 : index
    %c0_3 = arith.constant 0 : index
    %c0_4 = arith.constant 0 : index
    %2 = vector.load %arg3[%c0_2, %c0_3, %c0_4] : memref<1x32x128xbf16, #tpu.memory_space<vmem>>, vector<1x32x128xbf16>
    %3 = vector.shape_cast %2 : vector<1x32x128xbf16> to vector<32x128xbf16>
    %cst = arith.constant dense<0.000000e+00> : vector<64x128xf32>
    %4 = tpu.matmul %1, %3, %cst {dimension_numbers = #tpu.dot_dimension_numbers<[1], [0], [0], [1], [0, 0, 1, 1], [], []>} : vector<64x32xbf16>, vector<32x128xbf16>, vector<64x128xf32> -> vector<64x128xf32>
    %c0_5 = arith.constant 0 : index
    %c0_6 = arith.constant 0 : index
    %c0_7 = arith.constant 0 : index
    %5 = vector.load %arg5[%c0_5, %c0_6, %c0_7] : memref<1x1x128xf32, #tpu.memory_space<vmem>>, vector<1x1x128xf32>
    %6 = vector.shape_cast %5 : vector<1x1x128xf32> to vector<1x128xf32>
    %7 = vector.broadcast %6 : vector<1x128xf32> to vector<64x128xf32>
    %8 = arith.addf %4, %7 : vector<64x128xf32>
    %9 = tpu.iota {dimensions = array<i32: 1>} : vector<1x128xi32>
    %c32_i32 = arith.constant 32 : i32
    %c0_i32 = arith.constant 0 : i32
    %10 = arith.cmpi eq, %c32_i32, %c0_i32 : i32
    %c1_i32 = arith.constant 1 : i32
    %11 = arith.select %10, %c1_i32, %c32_i32 : i32
    %12 = vector.broadcast %11 : i32 to vector<1x128xi32>
    %13 = arith.remsi %9, %12 : vector<1x128xi32>
    %c0_i32_8 = arith.constant 0 : i32
    %14 = vector.broadcast %c0_i32_8 : i32 to vector<1x128xi32>
    %15 = arith.cmpi ne, %13, %14 : vector<1x128xi32>
    %c0_i32_9 = arith.constant 0 : i32
    %16 = vector.broadcast %c0_i32_9 : i32 to vector<1x128xi32>
    %17 = arith.cmpi slt, %13, %16 : vector<1x128xi32>
    %c0_i32_10 = arith.constant 0 : i32
    %18 = arith.cmpi slt, %11, %c0_i32_10 : i32
    %19 = vector.broadcast %18 : i1 to vector<1x128xi1>
    %20 = vector.broadcast %19 : vector<1x128xi1> to vector<1x128xi1>
    %21 = arith.xori %17, %20 : vector<1x128xi1>
    %22 = arith.andi %21, %15 : vector<1x128xi1>
    %23 = vector.broadcast %11 : i32 to vector<1x128xi32>
    %24 = arith.addi %13, %23 : vector<1x128xi32>
    %25 = arith.select %22, %24, %13 : vector<1x128xi1>, vector<1x128xi32>
    %c16_i32 = arith.constant 16 : i32
    %26 = vector.broadcast %c16_i32 : i32 to vector<1x128xi32>
    %27 = arith.cmpi slt, %25, %26 : vector<1x128xi32>
    %28 = tpu.iota {dimensions = array<i32: 1>} : vector<1x32xi32>
    %c16_i32_11 = arith.constant 16 : i32
    %29 = vector.broadcast %c16_i32_11 : i32 to vector<1x32xi32>
    %30 = arith.cmpi slt, %28, %29 : vector<1x32xi32>
    %c0_12 = arith.constant 0 : index
    %c0_13 = arith.constant 0 : index
    %c0_14 = arith.constant 0 : index
    %31 = vector.load %arg2[%c0_12, %c0_13, %c0_14] : memref<1x8x1xi32, #tpu.memory_space<vmem>>, vector<1x8x1xi32>
    %32 = vector.shape_cast %31 : vector<1x8x1xi32> to vector<8x1xi32>
    %33 = vector.extract_strided_slice %8 {offsets = [0, 0], sizes = [8, 128], strides = [1, 1]} : vector<64x128xf32> to vector<8x128xf32>
    %34 = vector.extract_strided_slice %8 {offsets = [56, 0], sizes = [8, 128], strides = [1, 1]} : vector<64x128xf32> to vector<8x128xf32>
    %35 = vector.shape_cast %27 : vector<1x128xi1> to vector<1x128xi1>
    %36 = vector.broadcast %35 : vector<1x128xi1> to vector<8x128xi1>
    %37 = arith.select %36, %33, %34 : vector<8x128xi1>, vector<8x128xf32>
    %38 = vector.extract_strided_slice %8 {offsets = [8, 0], sizes = [8, 128], strides = [1, 1]} : vector<64x128xf32> to vector<8x128xf32>
    %39 = vector.extract_strided_slice %8 {offsets = [48, 0], sizes = [8, 128], strides = [1, 1]} : vector<64x128xf32> to vector<8x128xf32>
    %40 = vector.shape_cast %27 : vector<1x128xi1> to vector<1x128xi1>
    %41 = vector.broadcast %40 : vector<1x128xi1> to vector<8x128xi1>
    %42 = arith.select %41, %38, %39 : vector<8x128xi1>, vector<8x128xf32>
    %43 = vector.extract_strided_slice %8 {offsets = [16, 0], sizes = [8, 128], strides = [1, 1]} : vector<64x128xf32> to vector<8x128xf32>
    %44 = vector.extract_strided_slice %8 {offsets = [40, 0], sizes = [8, 128], strides = [1, 1]} : vector<64x128xf32> to vector<8x128xf32>
    %45 = vector.shape_cast %27 : vector<1x128xi1> to vector<1x128xi1>
    %46 = vector.broadcast %45 : vector<1x128xi1> to vector<8x128xi1>
    %47 = arith.select %46, %43, %44 : vector<8x128xi1>, vector<8x128xf32>
    %48 = vector.extract_strided_slice %8 {offsets = [24, 0], sizes = [8, 128], strides = [1, 1]} : vector<64x128xf32> to vector<8x128xf32>
    %49 = vector.extract_strided_slice %8 {offsets = [32, 0], sizes = [8, 128], strides = [1, 1]} : vector<64x128xf32> to vector<8x128xf32>
    %50 = vector.shape_cast %27 : vector<1x128xi1> to vector<1x128xi1>
    %51 = vector.broadcast %50 : vector<1x128xi1> to vector<8x128xi1>
    %52 = arith.select %51, %48, %49 : vector<8x128xi1>, vector<8x128xf32>
    %53 = vector.extract_strided_slice %8 {offsets = [32, 0], sizes = [8, 128], strides = [1, 1]} : vector<64x128xf32> to vector<8x128xf32>
    %54 = vector.extract_strided_slice %8 {offsets = [24, 0], sizes = [8, 128], strides = [1, 1]} : vector<64x128xf32> to vector<8x128xf32>
    %55 = vector.shape_cast %27 : vector<1x128xi1> to vector<1x128xi1>
    %56 = vector.broadcast %55 : vector<1x128xi1> to vector<8x128xi1>
    %57 = arith.select %56, %53, %54 : vector<8x128xi1>, vector<8x128xf32>
    %58 = vector.extract_strided_slice %8 {offsets = [40, 0], sizes = [8, 128], strides = [1, 1]} : vector<64x128xf32> to vector<8x128xf32>
    %59 = vector.extract_strided_slice %8 {offsets = [16, 0], sizes = [8, 128], strides = [1, 1]} : vector<64x128xf32> to vector<8x128xf32>
    %60 = vector.shape_cast %27 : vector<1x128xi1> to vector<1x128xi1>
    %61 = vector.broadcast %60 : vector<1x128xi1> to vector<8x128xi1>
    %62 = arith.select %61, %58, %59 : vector<8x128xi1>, vector<8x128xf32>
    %63 = vector.extract_strided_slice %8 {offsets = [48, 0], sizes = [8, 128], strides = [1, 1]} : vector<64x128xf32> to vector<8x128xf32>
    %64 = vector.extract_strided_slice %8 {offsets = [8, 0], sizes = [8, 128], strides = [1, 1]} : vector<64x128xf32> to vector<8x128xf32>
    %65 = vector.shape_cast %27 : vector<1x128xi1> to vector<1x128xi1>
    %66 = vector.broadcast %65 : vector<1x128xi1> to vector<8x128xi1>
    %67 = arith.select %66, %63, %64 : vector<8x128xi1>, vector<8x128xf32>
    %68 = vector.extract_strided_slice %8 {offsets = [56, 0], sizes = [8, 128], strides = [1, 1]} : vector<64x128xf32> to vector<8x128xf32>
    %69 = vector.extract_strided_slice %8 {offsets = [0, 0], sizes = [8, 128], strides = [1, 1]} : vector<64x128xf32> to vector<8x128xf32>
    %70 = vector.shape_cast %27 : vector<1x128xi1> to vector<1x128xi1>
    %71 = vector.broadcast %70 : vector<1x128xi1> to vector<8x128xi1>
    %72 = arith.select %71, %68, %69 : vector<8x128xi1>, vector<8x128xf32>
    %c0_i32_15 = arith.constant 0 : i32
    %c7_i32 = arith.constant 7 : i32
    %73 = vector.broadcast %c0_i32_15 : i32 to vector<1x32xi32>
    %74 = vector.broadcast %c7_i32 : i32 to vector<1x32xi32>
    %75 = arith.select %30, %73, %74 : vector<1x32xi1>, vector<1x32xi32>
    %76 = vector.broadcast %75 : vector<1x32xi32> to vector<8x32xi32>
    %77 = vector.broadcast %32 : vector<8x1xi32> to vector<8x32xi32>
    %78 = arith.cmpi slt, %76, %77 : vector<8x32xi32>
    %79 = arith.extui %78 : vector<8x32xi1> to vector<8x32xi32>
    %80 = arith.sitofp %79 : vector<8x32xi32> to vector<8x32xf32>
    %c1_i32_16 = arith.constant 1 : i32
    %c6_i32 = arith.constant 6 : i32
    %81 = vector.broadcast %c1_i32_16 : i32 to vector<1x32xi32>
    %82 = vector.broadcast %c6_i32 : i32 to vector<1x32xi32>
    %83 = arith.select %30, %81, %82 : vector<1x32xi1>, vector<1x32xi32>
    %84 = vector.broadcast %83 : vector<1x32xi32> to vector<8x32xi32>
    %85 = vector.broadcast %32 : vector<8x1xi32> to vector<8x32xi32>
    %86 = arith.cmpi slt, %84, %85 : vector<8x32xi32>
    %87 = arith.extui %86 : vector<8x32xi1> to vector<8x32xi32>
    %88 = arith.sitofp %87 : vector<8x32xi32> to vector<8x32xf32>
    %c2_i32 = arith.constant 2 : i32
    %c5_i32 = arith.constant 5 : i32
    %89 = vector.broadcast %c2_i32 : i32 to vector<1x32xi32>
    %90 = vector.broadcast %c5_i32 : i32 to vector<1x32xi32>
    %91 = arith.select %30, %89, %90 : vector<1x32xi1>, vector<1x32xi32>
    %92 = vector.broadcast %91 : vector<1x32xi32> to vector<8x32xi32>
    %93 = vector.broadcast %32 : vector<8x1xi32> to vector<8x32xi32>
    %94 = arith.cmpi slt, %92, %93 : vector<8x32xi32>
    %95 = arith.extui %94 : vector<8x32xi1> to vector<8x32xi32>
    %96 = arith.sitofp %95 : vector<8x32xi32> to vector<8x32xf32>
    %c3_i32 = arith.constant 3 : i32
    %c4_i32 = arith.constant 4 : i32
    %97 = vector.broadcast %c3_i32 : i32 to vector<1x32xi32>
    %98 = vector.broadcast %c4_i32 : i32 to vector<1x32xi32>
    %99 = arith.select %30, %97, %98 : vector<1x32xi1>, vector<1x32xi32>
    %100 = vector.broadcast %99 : vector<1x32xi32> to vector<8x32xi32>
    %101 = vector.broadcast %32 : vector<8x1xi32> to vector<8x32xi32>
    %102 = arith.cmpi slt, %100, %101 : vector<8x32xi32>
    %103 = arith.extui %102 : vector<8x32xi1> to vector<8x32xi32>
    %104 = arith.sitofp %103 : vector<8x32xi32> to vector<8x32xf32>
    %c4_i32_17 = arith.constant 4 : i32
    %c3_i32_18 = arith.constant 3 : i32
    %105 = vector.broadcast %c4_i32_17 : i32 to vector<1x32xi32>
    %106 = vector.broadcast %c3_i32_18 : i32 to vector<1x32xi32>
    %107 = arith.select %30, %105, %106 : vector<1x32xi1>, vector<1x32xi32>
    %108 = vector.broadcast %107 : vector<1x32xi32> to vector<8x32xi32>
    %109 = vector.broadcast %32 : vector<8x1xi32> to vector<8x32xi32>
    %110 = arith.cmpi slt, %108, %109 : vector<8x32xi32>
    %111 = arith.extui %110 : vector<8x32xi1> to vector<8x32xi32>
    %112 = arith.sitofp %111 : vector<8x32xi32> to vector<8x32xf32>
    %c5_i32_19 = arith.constant 5 : i32
    %c2_i32_20 = arith.constant 2 : i32
    %113 = vector.broadcast %c5_i32_19 : i32 to vector<1x32xi32>
    %114 = vector.broadcast %c2_i32_20 : i32 to vector<1x32xi32>
    %115 = arith.select %30, %113, %114 : vector<1x32xi1>, vector<1x32xi32>
    %116 = vector.broadcast %115 : vector<1x32xi32> to vector<8x32xi32>
    %117 = vector.broadcast %32 : vector<8x1xi32> to vector<8x32xi32>
    %118 = arith.cmpi slt, %116, %117 : vector<8x32xi32>
    %119 = arith.extui %118 : vector<8x32xi1> to vector<8x32xi32>
    %120 = arith.sitofp %119 : vector<8x32xi32> to vector<8x32xf32>
    %c6_i32_21 = arith.constant 6 : i32
    %c1_i32_22 = arith.constant 1 : i32
    %121 = vector.broadcast %c6_i32_21 : i32 to vector<1x32xi32>
    %122 = vector.broadcast %c1_i32_22 : i32 to vector<1x32xi32>
    %123 = arith.select %30, %121, %122 : vector<1x32xi1>, vector<1x32xi32>
    %124 = vector.broadcast %123 : vector<1x32xi32> to vector<8x32xi32>
    %125 = vector.broadcast %32 : vector<8x1xi32> to vector<8x32xi32>
    %126 = arith.cmpi slt, %124, %125 : vector<8x32xi32>
    %127 = arith.extui %126 : vector<8x32xi1> to vector<8x32xi32>
    %128 = arith.sitofp %127 : vector<8x32xi32> to vector<8x32xf32>
    %c7_i32_23 = arith.constant 7 : i32
    %c0_i32_24 = arith.constant 0 : i32
    %129 = vector.broadcast %c7_i32_23 : i32 to vector<1x32xi32>
    %130 = vector.broadcast %c0_i32_24 : i32 to vector<1x32xi32>
    %131 = arith.select %30, %129, %130 : vector<1x32xi1>, vector<1x32xi32>
    %132 = vector.broadcast %131 : vector<1x32xi32> to vector<8x32xi32>
    %133 = vector.broadcast %32 : vector<8x1xi32> to vector<8x32xi32>
    %134 = arith.cmpi slt, %132, %133 : vector<8x32xi32>
    %135 = arith.extui %134 : vector<8x32xi1> to vector<8x32xi32>
    %136 = arith.sitofp %135 : vector<8x32xi32> to vector<8x32xf32>
    %c0_25 = arith.constant 0 : index
    %c0_26 = arith.constant 0 : index
    %c0_27 = arith.constant 0 : index
    %137 = vector.load %arg4[%c0_25, %c0_26, %c0_27] : memref<1x32x128xbf16, #tpu.memory_space<vmem>>, vector<1x32x128xbf16>
    %138 = vector.shape_cast %137 : vector<1x32x128xbf16> to vector<32x128xbf16>
    %cst_28 = arith.constant 0.000000e+00 : f32
    %139 = vector.broadcast %cst_28 : f32 to vector<8x32xf32>
    %cst_29 = arith.constant 0.000000e+00 : f32
    %140 = vector.broadcast %cst_29 : f32 to vector<8x32xf32>
    %141 = arith.truncf %139 : vector<8x32xf32> to vector<8x32xbf16>
    %cst_30 = arith.constant dense<0.000000e+00> : vector<8x128xf32>
    %142 = tpu.matmul %141, %138, %cst_30 {dimension_numbers = #tpu.dot_dimension_numbers<[1], [0], [0], [1], [0, 0, 1, 1], [], []>} : vector<8x32xbf16>, vector<32x128xbf16>, vector<8x128xf32> -> vector<8x128xf32>
    %143 = arith.addf %37, %142 : vector<8x128xf32>
    %144 = vector.extract_strided_slice %143 {offsets = [0, 0], sizes = [8, 96], strides = [1, 1]} : vector<8x128xf32> to vector<8x96xf32>
    %145 = arith.negf %144 : vector<8x96xf32>
    %146 = math.exp %145 : vector<8x96xf32>
    %cst_31 = arith.constant 1.000000e+00 : f32
    %147 = vector.broadcast %cst_31 : f32 to vector<8x96xf32>
    %148 = arith.addf %147, %146 : vector<8x96xf32>
    %149 = arith.divf %147, %148 : vector<8x96xf32>
    %150 = vector.extract_strided_slice %149 {offsets = [0, 0], sizes = [8, 32], strides = [1, 1]} : vector<8x96xf32> to vector<8x32xf32>
    %151 = vector.extract_strided_slice %149 {offsets = [0, 32], sizes = [8, 32], strides = [1, 1]} : vector<8x96xf32> to vector<8x32xf32>
    %152 = vector.extract_strided_slice %149 {offsets = [0, 64], sizes = [8, 32], strides = [1, 1]} : vector<8x96xf32> to vector<8x32xf32>
    %153 = vector.extract_strided_slice %143 {offsets = [0, 96], sizes = [8, 32], strides = [1, 1]} : vector<8x128xf32> to vector<8x32xf32>
    %154 = math.tanh %153 : vector<8x32xf32>
    %155 = arith.mulf %151, %140 : vector<8x32xf32>
    %156 = arith.mulf %150, %154 : vector<8x32xf32>
    %157 = arith.addf %155, %156 : vector<8x32xf32>
    %158 = math.tanh %157 : vector<8x32xf32>
    %159 = arith.mulf %152, %158 : vector<8x32xf32>
    %160 = arith.subf %157, %140 : vector<8x32xf32>
    %161 = arith.mulf %80, %160 : vector<8x32xf32>
    %162 = arith.addf %140, %161 : vector<8x32xf32>
    %163 = arith.subf %159, %139 : vector<8x32xf32>
    %164 = arith.mulf %80, %163 : vector<8x32xf32>
    %165 = arith.addf %139, %164 : vector<8x32xf32>
    %166 = arith.mulf %80, %159 : vector<8x32xf32>
    %167 = arith.truncf %165 : vector<8x32xf32> to vector<8x32xbf16>
    %cst_32 = arith.constant dense<0.000000e+00> : vector<8x128xf32>
    %168 = tpu.matmul %167, %138, %cst_32 {dimension_numbers = #tpu.dot_dimension_numbers<[1], [0], [0], [1], [0, 0, 1, 1], [], []>} : vector<8x32xbf16>, vector<32x128xbf16>, vector<8x128xf32> -> vector<8x128xf32>
    %169 = arith.addf %42, %168 : vector<8x128xf32>
    %170 = vector.extract_strided_slice %169 {offsets = [0, 0], sizes = [8, 96], strides = [1, 1]} : vector<8x128xf32> to vector<8x96xf32>
    %171 = arith.negf %170 : vector<8x96xf32>
    %172 = math.exp %171 : vector<8x96xf32>
    %cst_33 = arith.constant 1.000000e+00 : f32
    %173 = vector.broadcast %cst_33 : f32 to vector<8x96xf32>
    %174 = arith.addf %173, %172 : vector<8x96xf32>
    %175 = arith.divf %173, %174 : vector<8x96xf32>
    %176 = vector.extract_strided_slice %175 {offsets = [0, 0], sizes = [8, 32], strides = [1, 1]} : vector<8x96xf32> to vector<8x32xf32>
    %177 = vector.extract_strided_slice %175 {offsets = [0, 32], sizes = [8, 32], strides = [1, 1]} : vector<8x96xf32> to vector<8x32xf32>
    %178 = vector.extract_strided_slice %175 {offsets = [0, 64], sizes = [8, 32], strides = [1, 1]} : vector<8x96xf32> to vector<8x32xf32>
    %179 = vector.extract_strided_slice %169 {offsets = [0, 96], sizes = [8, 32], strides = [1, 1]} : vector<8x128xf32> to vector<8x32xf32>
    %180 = math.tanh %179 : vector<8x32xf32>
    %181 = arith.mulf %177, %162 : vector<8x32xf32>
    %182 = arith.mulf %176, %180 : vector<8x32xf32>
    %183 = arith.addf %181, %182 : vector<8x32xf32>
    %184 = math.tanh %183 : vector<8x32xf32>
    %185 = arith.mulf %178, %184 : vector<8x32xf32>
    %186 = arith.subf %183, %162 : vector<8x32xf32>
    %187 = arith.mulf %88, %186 : vector<8x32xf32>
    %188 = arith.addf %162, %187 : vector<8x32xf32>
    %189 = arith.subf %185, %165 : vector<8x32xf32>
    %190 = arith.mulf %88, %189 : vector<8x32xf32>
    %191 = arith.addf %165, %190 : vector<8x32xf32>
    %192 = arith.mulf %88, %185 : vector<8x32xf32>
    %193 = arith.truncf %191 : vector<8x32xf32> to vector<8x32xbf16>
    %cst_34 = arith.constant dense<0.000000e+00> : vector<8x128xf32>
    %194 = tpu.matmul %193, %138, %cst_34 {dimension_numbers = #tpu.dot_dimension_numbers<[1], [0], [0], [1], [0, 0, 1, 1], [], []>} : vector<8x32xbf16>, vector<32x128xbf16>, vector<8x128xf32> -> vector<8x128xf32>
    %195 = arith.addf %47, %194 : vector<8x128xf32>
    %196 = vector.extract_strided_slice %195 {offsets = [0, 0], sizes = [8, 96], strides = [1, 1]} : vector<8x128xf32> to vector<8x96xf32>
    %197 = arith.negf %196 : vector<8x96xf32>
    %198 = math.exp %197 : vector<8x96xf32>
    %cst_35 = arith.constant 1.000000e+00 : f32
    %199 = vector.broadcast %cst_35 : f32 to vector<8x96xf32>
    %200 = arith.addf %199, %198 : vector<8x96xf32>
    %201 = arith.divf %199, %200 : vector<8x96xf32>
    %202 = vector.extract_strided_slice %201 {offsets = [0, 0], sizes = [8, 32], strides = [1, 1]} : vector<8x96xf32> to vector<8x32xf32>
    %203 = vector.extract_strided_slice %201 {offsets = [0, 32], sizes = [8, 32], strides = [1, 1]} : vector<8x96xf32> to vector<8x32xf32>
    %204 = vector.extract_strided_slice %201 {offsets = [0, 64], sizes = [8, 32], strides = [1, 1]} : vector<8x96xf32> to vector<8x32xf32>
    %205 = vector.extract_strided_slice %195 {offsets = [0, 96], sizes = [8, 32], strides = [1, 1]} : vector<8x128xf32> to vector<8x32xf32>
    %206 = math.tanh %205 : vector<8x32xf32>
    %207 = arith.mulf %203, %188 : vector<8x32xf32>
    %208 = arith.mulf %202, %206 : vector<8x32xf32>
    %209 = arith.addf %207, %208 : vector<8x32xf32>
    %210 = math.tanh %209 : vector<8x32xf32>
    %211 = arith.mulf %204, %210 : vector<8x32xf32>
    %212 = arith.subf %209, %188 : vector<8x32xf32>
    %213 = arith.mulf %96, %212 : vector<8x32xf32>
    %214 = arith.addf %188, %213 : vector<8x32xf32>
    %215 = arith.subf %211, %191 : vector<8x32xf32>
    %216 = arith.mulf %96, %215 : vector<8x32xf32>
    %217 = arith.addf %191, %216 : vector<8x32xf32>
    %218 = arith.mulf %96, %211 : vector<8x32xf32>
    %219 = arith.truncf %217 : vector<8x32xf32> to vector<8x32xbf16>
    %cst_36 = arith.constant dense<0.000000e+00> : vector<8x128xf32>
    %220 = tpu.matmul %219, %138, %cst_36 {dimension_numbers = #tpu.dot_dimension_numbers<[1], [0], [0], [1], [0, 0, 1, 1], [], []>} : vector<8x32xbf16>, vector<32x128xbf16>, vector<8x128xf32> -> vector<8x128xf32>
    %221 = arith.addf %52, %220 : vector<8x128xf32>
    %222 = vector.extract_strided_slice %221 {offsets = [0, 0], sizes = [8, 96], strides = [1, 1]} : vector<8x128xf32> to vector<8x96xf32>
    %223 = arith.negf %222 : vector<8x96xf32>
    %224 = math.exp %223 : vector<8x96xf32>
    %cst_37 = arith.constant 1.000000e+00 : f32
    %225 = vector.broadcast %cst_37 : f32 to vector<8x96xf32>
    %226 = arith.addf %225, %224 : vector<8x96xf32>
    %227 = arith.divf %225, %226 : vector<8x96xf32>
    %228 = vector.extract_strided_slice %227 {offsets = [0, 0], sizes = [8, 32], strides = [1, 1]} : vector<8x96xf32> to vector<8x32xf32>
    %229 = vector.extract_strided_slice %227 {offsets = [0, 32], sizes = [8, 32], strides = [1, 1]} : vector<8x96xf32> to vector<8x32xf32>
    %230 = vector.extract_strided_slice %227 {offsets = [0, 64], sizes = [8, 32], strides = [1, 1]} : vector<8x96xf32> to vector<8x32xf32>
    %231 = vector.extract_strided_slice %221 {offsets = [0, 96], sizes = [8, 32], strides = [1, 1]} : vector<8x128xf32> to vector<8x32xf32>
    %232 = math.tanh %231 : vector<8x32xf32>
    %233 = arith.mulf %229, %214 : vector<8x32xf32>
    %234 = arith.mulf %228, %232 : vector<8x32xf32>
    %235 = arith.addf %233, %234 : vector<8x32xf32>
    %236 = math.tanh %235 : vector<8x32xf32>
    %237 = arith.mulf %230, %236 : vector<8x32xf32>
    %238 = arith.subf %235, %214 : vector<8x32xf32>
    %239 = arith.mulf %104, %238 : vector<8x32xf32>
    %240 = arith.addf %214, %239 : vector<8x32xf32>
    %241 = arith.subf %237, %217 : vector<8x32xf32>
    %242 = arith.mulf %104, %241 : vector<8x32xf32>
    %243 = arith.addf %217, %242 : vector<8x32xf32>
    %244 = arith.mulf %104, %237 : vector<8x32xf32>
    %245 = arith.truncf %243 : vector<8x32xf32> to vector<8x32xbf16>
    %cst_38 = arith.constant dense<0.000000e+00> : vector<8x128xf32>
    %246 = tpu.matmul %245, %138, %cst_38 {dimension_numbers = #tpu.dot_dimension_numbers<[1], [0], [0], [1], [0, 0, 1, 1], [], []>} : vector<8x32xbf16>, vector<32x128xbf16>, vector<8x128xf32> -> vector<8x128xf32>
    %247 = arith.addf %57, %246 : vector<8x128xf32>
    %248 = vector.extract_strided_slice %247 {offsets = [0, 0], sizes = [8, 96], strides = [1, 1]} : vector<8x128xf32> to vector<8x96xf32>
    %249 = arith.negf %248 : vector<8x96xf32>
    %250 = math.exp %249 : vector<8x96xf32>
    %cst_39 = arith.constant 1.000000e+00 : f32
    %251 = vector.broadcast %cst_39 : f32 to vector<8x96xf32>
    %252 = arith.addf %251, %250 : vector<8x96xf32>
    %253 = arith.divf %251, %252 : vector<8x96xf32>
    %254 = vector.extract_strided_slice %253 {offsets = [0, 0], sizes = [8, 32], strides = [1, 1]} : vector<8x96xf32> to vector<8x32xf32>
    %255 = vector.extract_strided_slice %253 {offsets = [0, 32], sizes = [8, 32], strides = [1, 1]} : vector<8x96xf32> to vector<8x32xf32>
    %256 = vector.extract_strided_slice %253 {offsets = [0, 64], sizes = [8, 32], strides = [1, 1]} : vector<8x96xf32> to vector<8x32xf32>
    %257 = vector.extract_strided_slice %247 {offsets = [0, 96], sizes = [8, 32], strides = [1, 1]} : vector<8x128xf32> to vector<8x32xf32>
    %258 = math.tanh %257 : vector<8x32xf32>
    %259 = arith.mulf %255, %240 : vector<8x32xf32>
    %260 = arith.mulf %254, %258 : vector<8x32xf32>
    %261 = arith.addf %259, %260 : vector<8x32xf32>
    %262 = math.tanh %261 : vector<8x32xf32>
    %263 = arith.mulf %256, %262 : vector<8x32xf32>
    %264 = arith.subf %261, %240 : vector<8x32xf32>
    %265 = arith.mulf %112, %264 : vector<8x32xf32>
    %266 = arith.addf %240, %265 : vector<8x32xf32>
    %267 = arith.subf %263, %243 : vector<8x32xf32>
    %268 = arith.mulf %112, %267 : vector<8x32xf32>
    %269 = arith.addf %243, %268 : vector<8x32xf32>
    %270 = arith.mulf %112, %263 : vector<8x32xf32>
    %271 = arith.truncf %269 : vector<8x32xf32> to vector<8x32xbf16>
    %cst_40 = arith.constant dense<0.000000e+00> : vector<8x128xf32>
    %272 = tpu.matmul %271, %138, %cst_40 {dimension_numbers = #tpu.dot_dimension_numbers<[1], [0], [0], [1], [0, 0, 1, 1], [], []>} : vector<8x32xbf16>, vector<32x128xbf16>, vector<8x128xf32> -> vector<8x128xf32>
    %273 = arith.addf %62, %272 : vector<8x128xf32>
    %274 = vector.extract_strided_slice %273 {offsets = [0, 0], sizes = [8, 96], strides = [1, 1]} : vector<8x128xf32> to vector<8x96xf32>
    %275 = arith.negf %274 : vector<8x96xf32>
    %276 = math.exp %275 : vector<8x96xf32>
    %cst_41 = arith.constant 1.000000e+00 : f32
    %277 = vector.broadcast %cst_41 : f32 to vector<8x96xf32>
    %278 = arith.addf %277, %276 : vector<8x96xf32>
    %279 = arith.divf %277, %278 : vector<8x96xf32>
    %280 = vector.extract_strided_slice %279 {offsets = [0, 0], sizes = [8, 32], strides = [1, 1]} : vector<8x96xf32> to vector<8x32xf32>
    %281 = vector.extract_strided_slice %279 {offsets = [0, 32], sizes = [8, 32], strides = [1, 1]} : vector<8x96xf32> to vector<8x32xf32>
    %282 = vector.extract_strided_slice %279 {offsets = [0, 64], sizes = [8, 32], strides = [1, 1]} : vector<8x96xf32> to vector<8x32xf32>
    %283 = vector.extract_strided_slice %273 {offsets = [0, 96], sizes = [8, 32], strides = [1, 1]} : vector<8x128xf32> to vector<8x32xf32>
    %284 = math.tanh %283 : vector<8x32xf32>
    %285 = arith.mulf %281, %266 : vector<8x32xf32>
    %286 = arith.mulf %280, %284 : vector<8x32xf32>
    %287 = arith.addf %285, %286 : vector<8x32xf32>
    %288 = math.tanh %287 : vector<8x32xf32>
    %289 = arith.mulf %282, %288 : vector<8x32xf32>
    %290 = arith.subf %287, %266 : vector<8x32xf32>
    %291 = arith.mulf %120, %290 : vector<8x32xf32>
    %292 = arith.addf %266, %291 : vector<8x32xf32>
    %293 = arith.subf %289, %269 : vector<8x32xf32>
    %294 = arith.mulf %120, %293 : vector<8x32xf32>
    %295 = arith.addf %269, %294 : vector<8x32xf32>
    %296 = arith.mulf %120, %289 : vector<8x32xf32>
    %297 = arith.truncf %295 : vector<8x32xf32> to vector<8x32xbf16>
    %cst_42 = arith.constant dense<0.000000e+00> : vector<8x128xf32>
    %298 = tpu.matmul %297, %138, %cst_42 {dimension_numbers = #tpu.dot_dimension_numbers<[1], [0], [0], [1], [0, 0, 1, 1], [], []>} : vector<8x32xbf16>, vector<32x128xbf16>, vector<8x128xf32> -> vector<8x128xf32>
    %299 = arith.addf %67, %298 : vector<8x128xf32>
    %300 = vector.extract_strided_slice %299 {offsets = [0, 0], sizes = [8, 96], strides = [1, 1]} : vector<8x128xf32> to vector<8x96xf32>
    %301 = arith.negf %300 : vector<8x96xf32>
    %302 = math.exp %301 : vector<8x96xf32>
    %cst_43 = arith.constant 1.000000e+00 : f32
    %303 = vector.broadcast %cst_43 : f32 to vector<8x96xf32>
    %304 = arith.addf %303, %302 : vector<8x96xf32>
    %305 = arith.divf %303, %304 : vector<8x96xf32>
    %306 = vector.extract_strided_slice %305 {offsets = [0, 0], sizes = [8, 32], strides = [1, 1]} : vector<8x96xf32> to vector<8x32xf32>
    %307 = vector.extract_strided_slice %305 {offsets = [0, 32], sizes = [8, 32], strides = [1, 1]} : vector<8x96xf32> to vector<8x32xf32>
    %308 = vector.extract_strided_slice %305 {offsets = [0, 64], sizes = [8, 32], strides = [1, 1]} : vector<8x96xf32> to vector<8x32xf32>
    %309 = vector.extract_strided_slice %299 {offsets = [0, 96], sizes = [8, 32], strides = [1, 1]} : vector<8x128xf32> to vector<8x32xf32>
    %310 = math.tanh %309 : vector<8x32xf32>
    %311 = arith.mulf %307, %292 : vector<8x32xf32>
    %312 = arith.mulf %306, %310 : vector<8x32xf32>
    %313 = arith.addf %311, %312 : vector<8x32xf32>
    %314 = math.tanh %313 : vector<8x32xf32>
    %315 = arith.mulf %308, %314 : vector<8x32xf32>
    %316 = arith.subf %313, %292 : vector<8x32xf32>
    %317 = arith.mulf %128, %316 : vector<8x32xf32>
    %318 = arith.addf %292, %317 : vector<8x32xf32>
    %319 = arith.subf %315, %295 : vector<8x32xf32>
    %320 = arith.mulf %128, %319 : vector<8x32xf32>
    %321 = arith.addf %295, %320 : vector<8x32xf32>
    %322 = arith.mulf %128, %315 : vector<8x32xf32>
    %323 = arith.truncf %321 : vector<8x32xf32> to vector<8x32xbf16>
    %cst_44 = arith.constant dense<0.000000e+00> : vector<8x128xf32>
    %324 = tpu.matmul %323, %138, %cst_44 {dimension_numbers = #tpu.dot_dimension_numbers<[1], [0], [0], [1], [0, 0, 1, 1], [], []>} : vector<8x32xbf16>, vector<32x128xbf16>, vector<8x128xf32> -> vector<8x128xf32>
    %325 = arith.addf %72, %324 : vector<8x128xf32>
    %326 = vector.extract_strided_slice %325 {offsets = [0, 0], sizes = [8, 96], strides = [1, 1]} : vector<8x128xf32> to vector<8x96xf32>
    %327 = arith.negf %326 : vector<8x96xf32>
    %328 = math.exp %327 : vector<8x96xf32>
    %cst_45 = arith.constant 1.000000e+00 : f32
    %329 = vector.broadcast %cst_45 : f32 to vector<8x96xf32>
    %330 = arith.addf %329, %328 : vector<8x96xf32>
    %331 = arith.divf %329, %330 : vector<8x96xf32>
    %332 = vector.extract_strided_slice %331 {offsets = [0, 0], sizes = [8, 32], strides = [1, 1]} : vector<8x96xf32> to vector<8x32xf32>
    %333 = vector.extract_strided_slice %331 {offsets = [0, 32], sizes = [8, 32], strides = [1, 1]} : vector<8x96xf32> to vector<8x32xf32>
    %334 = vector.extract_strided_slice %331 {offsets = [0, 64], sizes = [8, 32], strides = [1, 1]} : vector<8x96xf32> to vector<8x32xf32>
    %335 = vector.extract_strided_slice %325 {offsets = [0, 96], sizes = [8, 32], strides = [1, 1]} : vector<8x128xf32> to vector<8x32xf32>
    %336 = math.tanh %335 : vector<8x32xf32>
    %337 = arith.mulf %333, %318 : vector<8x32xf32>
    %338 = arith.mulf %332, %336 : vector<8x32xf32>
    %339 = arith.addf %337, %338 : vector<8x32xf32>
    %340 = math.tanh %339 : vector<8x32xf32>
    %341 = arith.mulf %334, %340 : vector<8x32xf32>
    %342 = arith.mulf %136, %341 : vector<8x32xf32>
    %343 = vector.shape_cast %30 : vector<1x32xi1> to vector<1x32xi1>
    %344 = vector.broadcast %343 : vector<1x32xi1> to vector<8x32xi1>
    %345 = arith.select %344, %166, %342 : vector<8x32xi1>, vector<8x32xf32>
    %346 = vector.shape_cast %30 : vector<1x32xi1> to vector<1x32xi1>
    %347 = vector.broadcast %346 : vector<1x32xi1> to vector<8x32xi1>
    %348 = arith.select %347, %192, %322 : vector<8x32xi1>, vector<8x32xf32>
    %349 = vector.shape_cast %30 : vector<1x32xi1> to vector<1x32xi1>
    %350 = vector.broadcast %349 : vector<1x32xi1> to vector<8x32xi1>
    %351 = arith.select %350, %218, %296 : vector<8x32xi1>, vector<8x32xf32>
    %352 = vector.shape_cast %30 : vector<1x32xi1> to vector<1x32xi1>
    %353 = vector.broadcast %352 : vector<1x32xi1> to vector<8x32xi1>
    %354 = arith.select %353, %244, %270 : vector<8x32xi1>, vector<8x32xf32>
    %355 = vector.shape_cast %30 : vector<1x32xi1> to vector<1x32xi1>
    %356 = vector.broadcast %355 : vector<1x32xi1> to vector<8x32xi1>
    %357 = arith.select %356, %270, %244 : vector<8x32xi1>, vector<8x32xf32>
    %358 = vector.shape_cast %30 : vector<1x32xi1> to vector<1x32xi1>
    %359 = vector.broadcast %358 : vector<1x32xi1> to vector<8x32xi1>
    %360 = arith.select %359, %296, %218 : vector<8x32xi1>, vector<8x32xf32>
    %361 = vector.shape_cast %30 : vector<1x32xi1> to vector<1x32xi1>
    %362 = vector.broadcast %361 : vector<1x32xi1> to vector<8x32xi1>
    %363 = arith.select %362, %322, %192 : vector<8x32xi1>, vector<8x32xf32>
    %364 = vector.shape_cast %30 : vector<1x32xi1> to vector<1x32xi1>
    %365 = vector.broadcast %364 : vector<1x32xi1> to vector<8x32xi1>
    %366 = arith.select %365, %342, %166 : vector<8x32xi1>, vector<8x32xf32>
    %367 = tpu.concatenate %345, %348, %351, %354, %357, %360, %363, %366 in 1 : vector<8x32xf32>, vector<8x32xf32>, vector<8x32xf32>, vector<8x32xf32>, vector<8x32xf32>, vector<8x32xf32>, vector<8x32xf32>, vector<8x32xf32> -> vector<8x256xf32>
    %368 = arith.truncf %367 : vector<8x256xf32> to vector<8x256xbf16>
    %c0_46 = arith.constant 0 : index
    %c0_47 = arith.constant 0 : index
    %c0_48 = arith.constant 0 : index
    %369 = vector.load %arg6[%c0_46, %c0_47, %c0_48] : memref<1x8x256xbf16, #tpu.memory_space<vmem>>, vector<1x8x256xbf16>
    %370 = vector.shape_cast %369 : vector<1x8x256xbf16> to vector<8x256xbf16>
    %371 = vector.shape_cast %368 : vector<8x256xbf16> to vector<1x8x256xbf16>
    tpu.vector_store %arg6[%c0_46, %c0_47, %c0_48], %371 {strides = array<i32>} : memref<1x8x256xbf16, #tpu.memory_space<vmem>>, vector<1x8x256xbf16>,
    return
  }
  func.func @transform_0(%arg0: i32) -> (i32, i32, i32) {
    %c0_i32 = arith.constant 0 : i32
    %c0_i32_0 = arith.constant 0 : i32
    %c0_i32_1 = arith.constant 0 : i32
    return %arg0, %c0_i32, %c0_i32_0 : i32, i32, i32
  }
  func.func @transform_1(%arg0: i32) -> (i32, i32, i32) {
    %c0_i32 = arith.constant 0 : i32
    %c0_i32_0 = arith.constant 0 : i32
    %c0_i32_1 = arith.constant 0 : i32
    return %arg0, %c0_i32, %c0_i32_0 : i32, i32, i32
  }
  func.func @transform_2(%arg0: i32) -> (i32, i32, i32) {
    %c0_i32 = arith.constant 0 : i32
    %c0_i32_0 = arith.constant 0 : i32
    %c0_i32_1 = arith.constant 0 : i32
    return %arg0, %c0_i32, %c0_i32_0 : i32, i32, i32
  }
  func.func @transform_3(%arg0: i32) -> (i32, i32, i32) {
    %c0_i32 = arith.constant 0 : i32
    %c0_i32_0 = arith.constant 0 : i32
    %c0_i32_1 = arith.constant 0 : i32
    return %arg0, %c0_i32, %c0_i32_0 : i32, i32, i32
  }
  func.func @transform_4(%arg0: i32) -> (i32, i32, i32) {
    %c0_i32 = arith.constant 0 : i32
    %c0_i32_0 = arith.constant 0 : i32
    %c0_i32_1 = arith.constant 0 : i32
    return %arg0, %c0_i32, %c0_i32_0 : i32, i32, i32
  }
  func.func @transform_5(%arg0: i32) -> (i32, i32, i32) {
    %c0_i32 = arith.constant 0 : i32
    %c0_i32_0 = arith.constant 0 : i32
    %c0_i32_1 = arith.constant 0 : i32
    return %arg0, %c0_i32, %c0_i32_0 : i32, i32, i32
  }
}

module attributes {stable_mosaic.version = 11 : i64} {
  func.func @aoa_kernel(%arg0: i32, %arg1: memref<2x8x8x32xbf16, #tpu.memory_space<vmem>>, %arg2: memref<32x3xf32, #tpu.memory_space<vmem>>, %arg3: memref<1x3xf32, #tpu.memory_space<vmem>>, %arg4: memref<8x3xf32, #tpu.memory_space<vmem>>) attributes {dimension_semantics = [#tpu.dimension_semantics<parallel>], iteration_bounds = array<i64: 1>, scalar_prefetch = 0 : i64, scratch_operands = 0 : i64, tpu.core_type = #tpu.core_type<tc>, window_params = [{transform_indices = @transform_0, window_bounds = array<i64: 2, 8, 8, 32>}, {pipeline_mode = #tpu.pipeline_mode<synchronous>, transform_indices = @transform_1, window_bounds = array<i64: 32, 3>}, {pipeline_mode = #tpu.pipeline_mode<synchronous>, transform_indices = @transform_2, window_bounds = array<i64: 1, 3>}, {transform_indices = @transform_3, window_bounds = array<i64: 8, 3>}]} {
    %c0 = arith.constant 0 : index
    %c0_0 = arith.constant 0 : index
    %c0_1 = arith.constant 0 : index
    %c0_2 = arith.constant 0 : index
    %0 = vector.load %arg1[%c0, %c0_0, %c0_1, %c0_2] : memref<2x8x8x32xbf16, #tpu.memory_space<vmem>>, vector<1x8x8x32xbf16>
    %1 = vector.shape_cast %0 : vector<1x8x8x32xbf16> to vector<8x8x32xbf16>
    %c1 = arith.constant 1 : index
    %c0_3 = arith.constant 0 : index
    %c0_4 = arith.constant 0 : index
    %c0_5 = arith.constant 0 : index
    %2 = vector.load %arg1[%c1, %c0_3, %c0_4, %c0_5] : memref<2x8x8x32xbf16, #tpu.memory_space<vmem>>, vector<1x8x6x32xbf16>
    %3 = vector.shape_cast %2 : vector<1x8x6x32xbf16> to vector<8x6x32xbf16>
    "tpu.trace_start"() <{level = 10 : i32, message = "btd,bsd->bts"}> : () -> ()
    %cst = arith.constant dense<0.000000e+00> : vector<8x8x6xf32>
    %4 = tpu.matmul %1, %3, %cst {dimension_numbers = #tpu.dot_dimension_numbers<[2], [2], [1], [1], [0, 0, 0, 1, 1, 1], [0], [0]>} : vector<8x8x32xbf16>, vector<8x6x32xbf16>, vector<8x8x6xf32> -> vector<8x8x6xf32>
    "tpu.trace_stop"() : () -> ()
    "tpu.trace_start"() <{level = 10 : i32, message = "bsd,btd->bst"}> : () -> ()
    %cst_6 = arith.constant dense<0.000000e+00> : vector<8x6x8xf32>
    %5 = tpu.matmul %3, %1, %cst_6 {dimension_numbers = #tpu.dot_dimension_numbers<[2], [2], [1], [1], [0, 0, 0, 1, 1, 1], [0], [0]>} : vector<8x6x32xbf16>, vector<8x8x32xbf16>, vector<8x6x8xf32> -> vector<8x6x8xf32>
    "tpu.trace_stop"() : () -> ()
    %cst_7 = arith.constant dense<0xFF800000> : vector<8x8xf32>
    %6 = vector.multi_reduction <maximumf>, %4, %cst_7 [2] : vector<8x8x6xf32> to vector<8x8xf32>
    %7 = vector.shape_cast %6 : vector<8x8xf32> to vector<8x8x1xf32>
    %8 = vector.broadcast %7 : vector<8x8x1xf32> to vector<8x8x6xf32>
    %9 = arith.subf %4, %8 : vector<8x8x6xf32>
    %10 = math.exp %9 : vector<8x8x6xf32>
    %cst_8 = arith.constant dense<0.000000e+00> : vector<8x8xf32>
    %11 = vector.multi_reduction <add>, %10, %cst_8 [2] : vector<8x8x6xf32> to vector<8x8xf32>
    %12 = vector.shape_cast %11 : vector<8x8xf32> to vector<8x8x1xf32>
    %13 = tpu.reciprocal %12 {approx = true} : vector<8x8x1xf32> -> vector<8x8x1xf32>
    %14 = vector.broadcast %13 : vector<8x8x1xf32> to vector<8x8x6xf32>
    %15 = arith.mulf %10, %14 : vector<8x8x6xf32>
    %cst_9 = arith.constant dense<0xFF800000> : vector<8x6xf32>
    %16 = vector.multi_reduction <maximumf>, %5, %cst_9 [2] : vector<8x6x8xf32> to vector<8x6xf32>
    %17 = vector.shape_cast %16 : vector<8x6xf32> to vector<8x6x1xf32>
    %18 = vector.broadcast %17 : vector<8x6x1xf32> to vector<8x6x8xf32>
    %19 = arith.subf %5, %18 : vector<8x6x8xf32>
    %20 = math.exp %19 : vector<8x6x8xf32>
    %cst_10 = arith.constant dense<0.000000e+00> : vector<8x6xf32>
    %21 = vector.multi_reduction <add>, %20, %cst_10 [2] : vector<8x6x8xf32> to vector<8x6xf32>
    %22 = vector.shape_cast %21 : vector<8x6xf32> to vector<8x6x1xf32>
    %23 = tpu.reciprocal %22 {approx = true} : vector<8x6x1xf32> -> vector<8x6x1xf32>
    %24 = vector.broadcast %23 : vector<8x6x1xf32> to vector<8x6x8xf32>
    %25 = arith.mulf %20, %24 : vector<8x6x8xf32>
    %cst_11 = arith.constant dense<0.000000e+00> : vector<8x6xf32>
    %26 = vector.multi_reduction <add>, %15, %cst_11 [1] : vector<8x8x6xf32> to vector<8x6xf32>
    %cst_12 = arith.constant 8.000000e+00 : f32
    %27 = vector.broadcast %cst_12 : f32 to vector<8x6xf32>
    %28 = arith.divf %26, %27 : vector<8x6xf32>
    %29 = vector.shape_cast %28 : vector<8x6xf32> to vector<8x6x1xf32>
    %30 = vector.broadcast %29 : vector<8x6x1xf32> to vector<8x6x8xf32>
    %31 = arith.mulf %25, %30 : vector<8x6x8xf32>
    %cst_13 = arith.constant dense<0.000000e+00> : vector<8x8xf32>
    %32 = vector.multi_reduction <add>, %31, %cst_13 [1] : vector<8x6x8xf32> to vector<8x8xf32>
    %33 = vector.shape_cast %32 : vector<8x8xf32> to vector<8x1x8xf32>
    %34 = arith.truncf %33 : vector<8x1x8xf32> to vector<8x1x8xbf16>
    "tpu.trace_start"() <{level = 10 : i32, message = "bqt,btd->bqd"}> : () -> ()
    %cst_14 = arith.constant dense<0.000000e+00> : vector<8x1x32xf32>
    %35 = tpu.matmul %34, %1, %cst_14 {dimension_numbers = #tpu.dot_dimension_numbers<[2], [1], [1], [2], [0, 0, 0, 1, 1, 2], [0], [0]>} : vector<8x1x8xbf16>, vector<8x8x32xbf16>, vector<8x1x32xf32> -> vector<8x1x32xf32>
    "tpu.trace_stop"() : () -> ()
    %36 = vector.shape_cast %35 : vector<8x1x32xf32> to vector<8x32xf32>
    %c0_15 = arith.constant 0 : index
    %c0_16 = arith.constant 0 : index
    %37 = vector.load %arg2[%c0_15, %c0_16] : memref<32x3xf32, #tpu.memory_space<vmem>>, vector<32x3xf32>
    %cst_17 = arith.constant dense<0.000000e+00> : vector<8x3xf32>
    %38 = tpu.matmul %36, %37, %cst_17 {dimension_numbers = #tpu.dot_dimension_numbers<[1], [0], [0], [1], [0, 0, 1, 1], [], []>} : vector<8x32xf32>, vector<32x3xf32>, vector<8x3xf32> -> vector<8x3xf32>
    %c0_18 = arith.constant 0 : index
    %c0_19 = arith.constant 0 : index
    %39 = vector.load %arg3[%c0_18, %c0_19] : memref<1x3xf32, #tpu.memory_space<vmem>>, vector<1x3xf32>
    %40 = vector.broadcast %39 : vector<1x3xf32> to vector<8x3xf32>
    %41 = arith.addf %38, %40 : vector<8x3xf32>
    %c0_20 = arith.constant 0 : index
    %c0_21 = arith.constant 0 : index
    %42 = vector.load %arg4[%c0_20, %c0_21] : memref<8x3xf32, #tpu.memory_space<vmem>>, vector<8x3xf32>
    tpu.vector_store %arg4[%c0_20, %c0_21], %41 {strides = array<i32>} : memref<8x3xf32, #tpu.memory_space<vmem>>, vector<8x3xf32>,
    return
  }
  func.func @transform_0(%arg0: i32) -> (i32, i32, i32, i32) {
    %c0_i32 = arith.constant 0 : i32
    %c0_i32_0 = arith.constant 0 : i32
    %c0_i32_1 = arith.constant 0 : i32
    %c0_i32_2 = arith.constant 0 : i32
    return %c0_i32, %arg0, %c0_i32_0, %c0_i32_1 : i32, i32, i32, i32
  }
  func.func @transform_1(%arg0: i32) -> (i32, i32) {
    %c0_i32 = arith.constant 0 : i32
    %c0_i32_0 = arith.constant 0 : i32
    %c0_i32_1 = arith.constant 0 : i32
    return %c0_i32, %c0_i32_0 : i32, i32
  }
  func.func @transform_2(%arg0: i32) -> (i32, i32) {
    %c0_i32 = arith.constant 0 : i32
    %c0_i32_0 = arith.constant 0 : i32
    %c0_i32_1 = arith.constant 0 : i32
    return %c0_i32, %c0_i32_0 : i32, i32
  }
  func.func @transform_3(%arg0: i32) -> (i32, i32) {
    %c0_i32 = arith.constant 0 : i32
    %c0_i32_0 = arith.constant 0 : i32
    return %arg0, %c0_i32 : i32, i32
  }
}

</mosaic_0001>

<llo_original>
// kernel: aoa_bert_forward.2
$region0: #{aoa_bert_forward.2}
  #allocation0 [shape = 'u32[]', space=smem, size = 0x4, offset = 0x4, fixed_abs, tag = 'smem constant byte address 0x4 - core index']
  #allocation1 [shape = 'u32[72,128]{1,0:T(1,128)}', space=vmem, size = 0x9000, scoped, tag = 'internal scratch']
  %s0 = inlined_call_operand.vmem [shape: bf16[2,64,32], index: 0, kind: input, shape index: {}]
  %s1 = inlined_call_operand.vmem [shape: s32[2,8,1], index: 1, kind: input, shape index: {}]
  %s2 = inlined_call_operand.vmem [shape: bf16[2,32,128], index: 2, kind: input, shape index: {}]
  %s3 = inlined_call_operand.vmem [shape: bf16[2,32,128], index: 3, kind: input, shape index: {}]
  %s4 = inlined_call_operand.vmem [shape: f32[2,1,128], index: 4, kind: input, shape index: {}]
  %s5 = inlined_call_operand.vmem [shape: bf16[2,8,256], index: 5, kind: output, shape index: {}]
  %s6 = sld [smem:[#allocation0]]
  $region53: #{aoa_bert_forward.2} parent=0
    _
  %s8 = ssub.s32 1, %s6
  %s9 = scalar_select 0, %s8, %s6
  loop: start=0, step=1, limit=4
  $region2: #{aoa_bert_forward.2} parent=0 // loop_pre_header
    _
  $region3: #{aoa_bert_forward.2} parent=0 // loop_header
    %s11 = sphi 0, %s15
    %p12 = scmp.ge.s32.totalorder %s11, 4
    %s21 = sphi 0, %s23
    %s24 = sphi 0, %s21
    %s25 = sphi 0, %s24
    %s41 = sphi 0, %s25
    %s47 = sphi 0, %s49
    %s50 = sphi 0, %s47
    %s51 = sphi 0, %s50
    %s67 = sphi 0, %s51
    %s73 = sphi 0, %s75
    %s76 = sphi 0, %s73
    %s77 = sphi 0, %s76
    %s93 = sphi 0, %s77
    %s99 = sphi 0, %s101
    %s102 = sphi 0, %s99
    %s103 = sphi 0, %s102
    %s119 = sphi 0, %s103
    %s125 = sphi 0, %s127
    %s128 = sphi 0, %s125
    %s129 = sphi 0, %s128
    %s145 = sphi 0, %s129
    %s151 = sphi 0, %s153
    %s154 = sphi 0, %s151
    %s155 = sphi 0, %s154
    %s171 = sphi 0, %s155
  $region4: #{aoa_bert_forward.2} parent=0 // loop_header_branch
    %14 = sbr.rel (%p12) target = $region8
  $region5: #{aoa_bert_forward.2} parent=0 // loop_body
    %s16 = ssub.s32 %s11, 1
    %s17 = ssub.s32 %s11, 2
    %s18 = sadd.s32 %s11, 1
    %s19 = ssub.s32 %s11, %s18
    %p20 = scmp.eq.s32.totalorder %s19, 0
    %s22 = sadd.s32 %s21, 1
    %s23 = scalar_select %p20, %s21, %s22
    %p26 = pneg %p20
    %p27 = scmp.eq.s32.totalorder %s11, 1
    %p28 = por %p26, %p27
    %p29 = scmp.ne.s32.totalorder %s21, %s24
    %p30 = scmp.eq.s32.totalorder %s11, 0
    %p31 = por %p29, %p30
    %p32 = scmp.ne.s32.totalorder %s21, %s24
    %p33 = scmp.eq.s32.totalorder %s16, 1
    %p34 = por %p32, %p33
    %p35 = scmp.ne.s32.totalorder %s24, %s25
    %p36 = scmp.eq.s32.totalorder %s16, 0
    %p37 = por %p35, %p36
    %p38 = scmp.ne.s32.totalorder %s24, %s25
    %p39 = scmp.eq.s32.totalorder %s17, 1
    %p40 = por %p38, %p39
    %p42 = scmp.ne.s32.totalorder %s25, %s41
    %p43 = scmp.eq.s32.totalorder %s17, 0
    %p44 = por %p42, %p43
    %s45 = ssub.s32 %s11, %s18
    %p46 = scmp.eq.s32.totalorder %s45, 0
    %s48 = sadd.s32 %s47, 1
    %s49 = scalar_select %p46, %s47, %s48
    %p52 = pneg %p46
    %p53 = scmp.eq.s32.totalorder %s11, 1
    %p54 = por %p52, %p53
    %p55 = scmp.ne.s32.totalorder %s47, %s50
    %p56 = scmp.eq.s32.totalorder %s11, 0
    %p57 = por %p55, %p56
    %p58 = scmp.ne.s32.totalorder %s47, %s50
    %p59 = scmp.eq.s32.totalorder %s16, 1
    %p60 = por %p58, %p59
    %p61 = scmp.ne.s32.totalorder %s50, %s51
    %p62 = scmp.eq.s32.totalorder %s16, 0
    %p63 = por %p61, %p62
    %p64 = scmp.ne.s32.totalorder %s50, %s51
    %p65 = scmp.eq.s32.totalorder %s17, 1
    %p66 = por %p64, %p65
    %p68 = scmp.ne.s32.totalorder %s51, %s67
    %p69 = scmp.eq.s32.totalorder %s17, 0
    %p70 = por %p68, %p69
    %s71 = ssub.s32 %s11, %s18
    %p72 = scmp.eq.s32.totalorder %s71, 0
    %s74 = sadd.s32 %s73, 1
    %s75 = scalar_select %p72, %s73, %s74
    %p78 = pneg %p72
    %p79 = scmp.eq.s32.totalorder %s11, 1
    %p80 = por %p78, %p79
    %p81 = scmp.ne.s32.totalorder %s73, %s76
    %p82 = scmp.eq.s32.totalorder %s11, 0
    %p83 = por %p81, %p82
    %p84 = scmp.ne.s32.totalorder %s73, %s76
    %p85 = scmp.eq.s32.totalorder %s16, 1
    %p86 = por %p84, %p85
    %p87 = scmp.ne.s32.totalorder %s76, %s77
    %p88 = scmp.eq.s32.totalorder %s16, 0
    %p89 = por %p87, %p88
    %p90 = scmp.ne.s32.totalorder %s76, %s77
    %p91 = scmp.eq.s32.totalorder %s17, 1
    %p92 = por %p90, %p91
    %p94 = scmp.ne.s32.totalorder %s77, %s93
    %p95 = scmp.eq.s32.totalorder %s17, 0
    %p96 = por %p94, %p95
    %s97 = ssub.s32 %s11, %s18
    %p98 = scmp.eq.s32.totalorder %s97, 0
    %s100 = sadd.s32 %s99, 1
    %s101 = scalar_select %p98, %s99, %s100
    %p104 = pneg %p98
    %p105 = scmp.eq.s32.totalorder %s11, 1
    %p106 = por %p104, %p105
    %p107 = scmp.ne.s32.totalorder %s99, %s102
    %p108 = scmp.eq.s32.totalorder %s11, 0
    %p109 = por %p107, %p108
    %p110 = scmp.ne.s32.totalorder %s99, %s102
    %p111 = scmp.eq.s32.totalorder %s16, 1
    %p112 = por %p110, %p111
    %p113 = scmp.ne.s32.totalorder %s102, %s103
    %p114 = scmp.eq.s32.totalorder %s16, 0
    %p115 = por %p113, %p114
    %p116 = scmp.ne.s32.totalorder %s102, %s103
    %p117 = scmp.eq.s32.totalorder %s17, 1
    %p118 = por %p116, %p117
    %p120 = scmp.ne.s32.totalorder %s103, %s119
    %p121 = scmp.eq.s32.totalorder %s17, 0
    %p122 = por %p120, %p121
    %s123 = ssub.s32 %s11, %s18
    %p124 = scmp.eq.s32.totalorder %s123, 0
    %s126 = sadd.s32 %s125, 1
    %s127 = scalar_select %p124, %s125, %s126
    %p130 = pneg %p124
    %p131 = scmp.eq.s32.totalorder %s11, 1
    %p132 = por %p130, %p131
    %p133 = scmp.ne.s32.totalorder %s125, %s128
    %p134 = scmp.eq.s32.totalorder %s11, 0
    %p135 = por %p133, %p134
    %p136 = scmp.ne.s32.totalorder %s125, %s128
    %p137 = scmp.eq.s32.totalorder %s16, 1
    %p138 = por %p136, %p137
    %p139 = scmp.ne.s32.totalorder %s128, %s129
    %p140 = scmp.eq.s32.totalorder %s16, 0
    %p141 = por %p139, %p140
    %p142 = scmp.ne.s32.totalorder %s128, %s129
    %p143 = scmp.eq.s32.totalorder %s17, 1
    %p144 = por %p142, %p143
    %p146 = scmp.ne.s32.totalorder %s129, %s145
    %p147 = scmp.eq.s32.totalorder %s17, 0
    %p148 = por %p146, %p147
    %s149 = ssub.s32 %s11, %s18
    %p150 = scmp.eq.s32.totalorder %s149, 0
    %s152 = sadd.s32 %s151, 1
    %s153 = scalar_select %p150, %s151, %s152
    %p156 = pneg %p150
    %p157 = scmp.eq.s32.totalorder %s11, 1
    %p158 = por %p156, %p157
    %p159 = scmp.ne.s32.totalorder %s151, %s154
    %p160 = scmp.eq.s32.totalorder %s11, 0
    %p161 = por %p159, %p160
    %p162 = scmp.ne.s32.totalorder %s151, %s154
    %p163 = scmp.eq.s32.totalorder %s16, 1
    %p164 = por %p162, %p163
    %p165 = scmp.ne.s32.totalorder %s154, %s155
    %p166 = scmp.eq.s32.totalorder %s16, 0
    %p167 = por %p165, %p166
    %p168 = scmp.ne.s32.totalorder %s154, %s155
    %p169 = scmp.eq.s32.totalorder %s17, 1
    %p170 = por %p168, %p169
    %p172 = scmp.ne.s32.totalorder %s155, %s171
    %p173 = scmp.eq.s32.totalorder %s17, 0
    %p174 = por %p172, %p173
    %p175 = scmp.le.s32.totalorder 1, %s11
    %p176 = scmp.lt.s32.totalorder %s11, 3
    %p177 = pnand %p175, %p176
    %p178 = pneg %p177
    // Predicated region
    $region9: #{aoa_bert_forward.2} parent=5 // pred_check
      _
    $region10: #{aoa_bert_forward.2} parent=5 // pred_check_branch
      %180 = sbr.rel (%p177) target = $region12
    $region11: #{aoa_bert_forward.2} parent=5 // pred_region
      %s181 = ssub.s32 %s11, 1
    $region12: #{aoa_bert_forward.2} parent=5 // pred_fallthru
      _
    %p182 = scmp.lt.s32.totalorder %s11, 2
    // Predicated region
    $region13: #{aoa_bert_forward.2} parent=5 // pred_check
      %p183 = pneg %p182
    $region14: #{aoa_bert_forward.2} parent=5 // pred_check_branch
      %185 = sbr.rel (%p183) target = $region16
    $region15: #{aoa_bert_forward.2} parent=5 // pred_region
      // Predicated region
      $region17: #{aoa_bert_forward.2} parent=15 // pred_check
        %p186 = pneg %p31
      $region18: #{aoa_bert_forward.2} parent=15 // pred_check_branch
        %188 = sbr.rel (%p186) target = $region20
      $region19: #{aoa_bert_forward.2} parent=15 // pred_region
        %p189 = scmp.lt.s32.totalorder %s11, 1
        %s190 = scalar_select %p189, %s11, 1
        %s191 = smul.addr %s190, 8
        %s192 = smul.addr %s191, 4
        %s193 = scalar_lea.vmem %s0, %s192
      $region20: #{aoa_bert_forward.2} parent=15 // pred_fallthru
        _
      // Predicated region
      $region21: #{aoa_bert_forward.2} parent=15 // pred_check
        %p194 = pneg %p57
      $region22: #{aoa_bert_forward.2} parent=15 // pred_check_branch
        %196 = sbr.rel (%p194) target = $region24
      $region23: #{aoa_bert_forward.2} parent=15 // pred_region
        %p197 = scmp.lt.s32.totalorder %s11, 1
        %s198 = scalar_select %p197, %s11, 1
        %s199 = smul.addr %s198, 8
        %s200 = scalar_lea.vmem %s1, %s199
      $region24: #{aoa_bert_forward.2} parent=15 // pred_fallthru
        _
      // Predicated region
      $region25: #{aoa_bert_forward.2} parent=15 // pred_check
        %p201 = pneg %p83
      $region26: #{aoa_bert_forward.2} parent=15 // pred_check_branch
        %203 = sbr.rel (%p201) target = $region28
      $region27: #{aoa_bert_forward.2} parent=15 // pred_region
        %p204 = scmp.lt.s32.totalorder %s11, 1
        %s205 = scalar_select %p204, %s11, 1
        %s206 = smul.addr %s205, 4
        %s207 = smul.addr %s206, 4
        %s208 = scalar_lea.vmem %s2, %s207
      $region28: #{aoa_bert_forward.2} parent=15 // pred_fallthru
        _
      // Predicated region
      $region29: #{aoa_bert_forward.2} parent=15 // pred_check
        %p209 = pneg %p109
      $region30: #{aoa_bert_forward.2} parent=15 // pred_check_branch
        %211 = sbr.rel (%p209) target = $region32
      $region31: #{aoa_bert_forward.2} parent=15 // pred_region
        %p212 = scmp.lt.s32.totalorder %s11, 1
        %s213 = scalar_select %p212, %s11, 1
        %s214 = smul.addr %s213, 4
        %s215 = smul.addr %s214, 4
        %s216 = scalar_lea.vmem %s3, %s215
      $region32: #{aoa_bert_forward.2} parent=15 // pred_fallthru
        _
      // Predicated region
      $region33: #{aoa_bert_forward.2} parent=15 // pred_check
        %p217 = pneg %p135
      $region34: #{aoa_bert_forward.2} parent=15 // pred_check_branch
        %219 = sbr.rel (%p217) target = $region36
      $region35: #{aoa_bert_forward.2} parent=15 // pred_region
        %p220 = scmp.lt.s32.totalorder %s11, 1
        %s221 = scalar_select %p220, %s11, 1
        %s222 = scalar_lea.vmem %s4, %s221
      $region36: #{aoa_bert_forward.2} parent=15 // pred_fallthru
        _
    $region16: #{aoa_bert_forward.2} parent=5 // pred_fallthru
      _
    %p223 = scmp.le.s32.totalorder 1, %s11
    %p224 = scmp.lt.s32.totalorder %s11, 3
    %p225 = pnand %p223, %p224
    %p226 = pneg %p225
    // Predicated region
    $region37: #{aoa_bert_forward.2} parent=5 // pred_check
      _
    $region38: #{aoa_bert_forward.2} parent=5 // pred_check_branch
      %228 = sbr.rel (%p225) target = $region40
    $region39: #{aoa_bert_forward.2} parent=5 // pred_region
      %s229 = ssub.s32 %s11, 1
      %p230 = scmp.lt.s32.totalorder %s16, 1
      %s231 = scalar_select %p230, %s16, 1
      %s232 = smul.addr %s231, 8
      %s233 = smul.addr %s232, 4
      %s234 = scalar_lea.vmem %s0, %s233
      %p235 = pneg %p37
      %p236 = pneg %p34
      %p237 = scmp.lt.s32.totalorder %s16, 1
      %s238 = scalar_select %p237, %s16, 1
      %s239 = smul.addr %s238, 8
      %s240 = scalar_lea.vmem %s1, %s239
      %p241 = pneg %p63
      %p242 = pneg %p60
      %p243 = scmp.lt.s32.totalorder %s16, 1
      %s244 = scalar_select %p243, %s16, 1
      %s245 = smul.addr %s244, 4
      %s246 = smul.addr %s245, 4
      %s247 = scalar_lea.vmem %s2, %s246
      %p248 = pneg %p89
      %p249 = pneg %p86
      %p250 = scmp.lt.s32.totalorder %s16, 1
      %s251 = scalar_select %p250, %s16, 1
      %s252 = smul.addr %s251, 4
      %s253 = smul.addr %s252, 4
      %s254 = scalar_lea.vmem %s3, %s253
      %p255 = pneg %p115
      %p256 = pneg %p112
      %p257 = scmp.lt.s32.totalorder %s16, 1
      %s258 = scalar_select %p257, %s16, 1
      %s259 = scalar_lea.vmem %s4, %s258
      %p260 = pneg %p141
      %p261 = pneg %p138
      %p262 = pneg %p167
      %p263 = pneg %p164
      %p264 = scmp.lt.s32.totalorder %s16, 1
      %s265 = scalar_select %p264, %s16, 1
      %s266 = smul.addr %s265, 2
      %s267 = smul.addr %s266, 4
      %s268 = scalar_lea.vmem %s5, %s267
      %p269 = scmp.lt.s32.totalorder %s16, 1
      %s270 = scalar_select %p269, %s16, 1
      %s271 = smul.addr %s270, 8
      %s272 = smul.addr %s271, 4
      %s273 = scalar_lea.vmem %s0, %s272
      %p274 = scmp.lt.s32.totalorder %s16, 1
      %s275 = scalar_select %p274, %s16, 1
      %s276 = smul.addr %s275, 8
      %s277 = scalar_lea.vmem %s1, %s276
      %p278 = scmp.lt.s32.totalorder %s16, 1
      %s279 = scalar_select %p278, %s16, 1
      %s280 = smul.addr %s279, 4
      %s281 = smul.addr %s280, 4
      %s282 = scalar_lea.vmem %s2, %s281
      %p283 = scmp.lt.s32.totalorder %s16, 1
      %s284 = scalar_select %p283, %s16, 1
      %s285 = smul.addr %s284, 4
      %s286 = smul.addr %s285, 4
      %s287 = scalar_lea.vmem %s3, %s286
      %p288 = scmp.lt.s32.totalorder %s16, 1
      %s289 = scalar_select %p288, %s16, 1
      %s290 = scalar_lea.vmem %s4, %s289
      %p291 = scmp.lt.s32.totalorder %s16, 1
      %s292 = scalar_select %p291, %s16, 1
      %s293 = smul.addr %s292, 2
      %s294 = smul.addr %s293, 4
      %s295 = scalar_lea.vmem %s5, %s294
      %v297 = vld [vmem:[%s273] sm:$0xf]
      %v298 = vld [vmem:[%s273 + $0x4] sm:$0xf]
      %v299 = vld [vmem:[%s273 + $0x8] sm:$0xf]
      %v300 = vld [vmem:[%s273 + $0xc] sm:$0xf]
      %v301 = vld [vmem:[%s273 + $0x10] sm:$0xf]
      %v302 = vld [vmem:[%s273 + $0x14] sm:$0xf]
      %v303 = vld [vmem:[%s273 + $0x18] sm:$0xf]
      %v304 = vld [vmem:[%s273 + $0x1c] sm:$0xf]
      %v305 = vld [vmem:[%s282] sm:$0xf]
      %v306 = vld [vmem:[%s282 + $0x4] sm:$0xf]
      %v307 = vld [vmem:[%s282 + $0x8] sm:$0xf]
      %v308 = vld [vmem:[%s282 + $0xc] sm:$0xf]
      %v309 = vld [vmem:[%s290] sm:$0x1]
      %v311 = vperm.slane %v309, 0
      %v321 = vunpack.c.l.b16 %v297
      %v322 = vunpack.c.l.b16 %v298
      %v323 = vunpack.c.l.b16 %v299
      %v324 = vunpack.c.l.b16 %v300
      %v325 = vunpack.c.l.b16 %v301
      %v326 = vunpack.c.l.b16 %v302
      %v327 = vunpack.c.l.b16 %v303
      %v328 = vunpack.c.l.b16 %v304
      %v329 = vpack.c.b16 %v322, %v321
      %v330 = vpack.c.b16 %v324, %v323
      %v331 = vpack.c.b16 %v326, %v325
      %v332 = vpack.c.b16 %v328, %v327
      %v337 = vunpack.c.l.b16 %v305
      %v338 = vunpack.c.l.b16 %v306
      %v339 = vunpack.c.l.b16 %v307
      %v340 = vunpack.c.l.b16 %v308
      %v341 = vpack.c.b16 %v338, %v337
      %v342 = vpack.c.b16 %v340, %v339
      %vm345 = vcmask 261120
      %v347 = vsel %vm345, %v329, 0
      %v350 = vsel %vm345, %v330, 0
      %v353 = vsel %vm345, %v331, 0
      %v356 = vsel %vm345, %v332, 0
      %358 = vmatpush.bf16.msra.mxu0 0
      %359 = vmatpush.bf16.msra.mxu0 0
      %360 = vmatpush.bf16.msra.mxu0 0
      %361 = vmatpush.bf16.msra.mxu0 0
      %362 = vmatpush.bf16.msra.mxu0 0
      %363 = vmatpush.bf16.msra.mxu0 0
      %364 = vmatpush.bf16.msra.mxu0 %v342
      %365 = vmatpush.bf16.msra.mxu0 %v341
      %366 = vmatmul.bf16.gmra.mxu0 %v347
      %v367 = vpop.f32.mrf.mxu0
      %v368 = vadd.f32 %v311, %v367
      %v369 = vpop.f32.mrf.mxu0
      %v370 = vadd.f32 %v311, %v369
      %371 = vmatmul.bf16.gmra.mxu0 %v350
      %v372 = vpop.f32.mrf.mxu0
      %v373 = vadd.f32 %v311, %v372
      %v374 = vpop.f32.mrf.mxu0
      %v375 = vadd.f32 %v311, %v374
      %376 = vmatmul.bf16.gmra.mxu0 %v353
      %v377 = vpop.f32.mrf.mxu0
      %v378 = vadd.f32 %v311, %v377
      %v379 = vpop.f32.mrf.mxu0
      %v380 = vadd.f32 %v311, %v379
      %381 = vmatmul.bf16.gmra.mxu0 %v356
      %v382 = vpop.f32.mrf.mxu0
      %v383 = vadd.f32 %v311, %v382
      %v384 = vpop.f32.mrf.mxu0
      %v385 = vadd.f32 %v311, %v384
      %386 = vdwg.mxu0
      %v387 = vlaneseq
      %v388 = vand.u32 %v387, 127
      %vm389 = vcmp.lt.s32.totalorder %v388, 0
      %v390 = vsub.s32 0, %v388
      %v391 = vsel %vm389, %v390, %v388
      %v392 = vshrl.u32 %v391, 5
      %v393 = vand.u32 %v391, 31
      %v394 = vsub.s32 0, %v393
      %v395 = vsel %vm389, %v394, %v393
      %vm396 = vcmp.ne.s32.totalorder %v395, 0
      %vm397 = vcmp.lt.s32.totalorder %v395, 0
      %vm398 = vmand %vm397, %vm396
      %v399 = vadd.s32 %v395, 32
      %v400 = vsel %vm398, %v399, %v395
      %vm401 = vcmp.lt.s32.totalorder %v400, 16
      %vm402 = vcmp.lt.s32.totalorder %v388, 16
      %v403 = vld [vmem:[%s277] sm:$0xff]
      %v404 = vsel %vm401, 1, 0
      %vm405 = vcmp.eq.s32.totalorder %v404, 1
      %v406 = vsel %vm405, %v368, %v385
      %v407 = vsel %vm405, %v370, %v383
      %v408 = vsel %vm405, %v373, %v380
      %v409 = vsel %vm405, %v375, %v378
      %v410 = vsel %vm405, %v378, %v375
      %v411 = vsel %vm405, %v380, %v373
      %v412 = vsel %vm405, %v383, %v370
      %v413 = vsel %vm405, %v385, %v368
      %v414 = vsel %vm402, 0, 7
      %415 = vset.pattern.permute.xlu0 0
      %416 = vperm.xlu0 %415, %v403
      %v417 = vpop.permute.xlu0 %416
      %vm418 = vcmp.lt.s32.totalorder %v414, %v417
      %v419 = vsel %vm418, 1, 0
      %v420 = vcvt.s32.f32 %v419
      %v421 = vsel %vm402, 1, 6
      %vm422 = vcmp.lt.s32.totalorder %v421, %v417
      %v423 = vsel %vm422, 1, 0
      %v424 = vcvt.s32.f32 %v423
      %v425 = vsel %vm402, 2, 5
      %vm426 = vcmp.lt.s32.totalorder %v425, %v417
      %v427 = vsel %vm426, 1, 0
      %v428 = vcvt.s32.f32 %v427
      %v429 = vsel %vm402, 3, 4
      %vm430 = vcmp.lt.s32.totalorder %v429, %v417
      %v431 = vsel %vm430, 1, 0
      %v432 = vcvt.s32.f32 %v431
      %v433 = vsel %vm402, 4, 3
      %vm434 = vcmp.lt.s32.totalorder %v433, %v417
      %v435 = vsel %vm434, 1, 0
      %v436 = vcvt.s32.f32 %v435
      %v437 = vsel %vm402, 5, 2
      %vm438 = vcmp.lt.s32.totalorder %v437, %v417
      %v439 = vsel %vm438, 1, 0
      %v440 = vcvt.s32.f32 %v439
      %v441 = vsel %vm402, 6, 1
      %vm442 = vcmp.lt.s32.totalorder %v441, %v417
      %v443 = vsel %vm442, 1, 0
      %v444 = vcvt.s32.f32 %v443
      %v445 = vsel %vm402, 7, 0
      %vm446 = vcmp.lt.s32.totalorder %v445, %v417
      %v447 = vsel %vm446, 1, 0
      %v448 = vcvt.s32.f32 %v447
      %v449 = vld [vmem:[%s287] sm:$0xf]
      %v450 = vld [vmem:[%s287 + $0x4] sm:$0xf]
      %v451 = vld [vmem:[%s287 + $0x8] sm:$0xf]
      %v452 = vld [vmem:[%s287 + $0xc] sm:$0xf]
      %v457 = vunpack.c.l.b16 %v449
      %v458 = vunpack.c.l.b16 %v450
      %v459 = vunpack.c.l.b16 %v451
      %v460 = vunpack.c.l.b16 %v452
      %v461 = vpack.c.b16 %v458, %v457
      %v462 = vpack.c.b16 %v460, %v459
      %v466 = vsel %vm345, 0, 0
      %468 = vmatpush.bf16.msra.mxu0 0
      %469 = vmatpush.bf16.msra.mxu0 0
      %470 = vmatpush.bf16.msra.mxu0 0
      %471 = vmatpush.bf16.msra.mxu0 0
      %472 = vmatpush.bf16.msra.mxu0 0
      %473 = vmatpush.bf16.msra.mxu0 0
      %474 = vmatpush.bf16.msra.mxu0 %v462
      %475 = vmatpush.bf16.msra.mxu0 %v461
      %476 = vmatmul.bf16.gmra.mxu0 %v466
      %v477 = vpop.f32.mrf.mxu0
      %v478 = vadd.f32 0.0, %v477
      %v479 = vpop.f32.mrf.mxu0
      %480 = vdwg.mxu0
      %v481 = vadd.f32 %v406, %v478
      %v482 = vxor.u32 %v481, 2147483648
      %v483 = vmul.f32 %v482, 1.442695
      %v484 = vpow.pop %v483
      %v485 = vadd.f32 %v484, 1.0
      %v486 = vrcp.pop %v485
      %v487 = vmul.f32 %v485, %v486
      %v488 = vsub.f32 1.0, %v487
      %v489 = vmul.f32 %v486, %v488
      %v490 = vadd.f32 %v486, %v489
      %vm491 = vweird.f32 %v485
      %vm492 = vweird.f32 %v486
      %vm493 = vmor %vm491, %vm492
      %v494 = vsel %vm493, %v486, %v490
      %v495 = vand.u32 2147483647, %v485
      %vm496 = vcmp.eq.f32.partialorder %v495, 8.507059e+37
      %v497 = vand.u32 %v485, 2147483648
      %v498 = vor.u32 1.1754944e-38, %v497
      %v499 = vsel %vm496, %v498, %v494
      %v500 = vmul.f32 1.0, %v499
      %v501 = vtanh.pop %v481
      %v502 = vmul.f32 %v500, 0.0
      %504 = vrot.lane.b32.xlu0 %v501, 32
      %v505 = vpop.permute.xlu0 %504
      %v507 = vmul.f32 %v500, %v505
      %509 = vrot.lane.b32.xlu0 %v507, 32
      %v510 = vpop.permute.xlu0 %509
      %v512 = vadd.f32 %v502, %v510
      %v513 = vtanh.pop %v512
      %515 = vrot.lane.b32.xlu0 %v513, 32
      %v516 = vpop.permute.xlu0 %515
      %v518 = vmul.f32 %v500, %v516
      %520 = vrot.lane.b32.xlu0 %v512, 96
      %v521 = vpop.permute.xlu0 %520
      %v523 = vmul.f32 %v420, %v521
      %v524 = vadd.f32 %v523, 0.0
      %526 = vrot.lane.b32.xlu0 %v518, 64
      %v527 = vpop.permute.xlu0 %526
      %v529 = vmul.f32 %v420, %v527
      %v530 = vadd.f32 %v529, 0.0
      %v531 = vpack.c.bf16 %v530, %v530
      %v533 = vsel %vm345, %v531, 0
      %535 = vmatpush.bf16.msra.mxu0 0
      %536 = vmatpush.bf16.msra.mxu0 0
      %537 = vmatpush.bf16.msra.mxu0 0
      %538 = vmatpush.bf16.msra.mxu0 0
      %539 = vmatpush.bf16.msra.mxu0 0
      %540 = vmatpush.bf16.msra.mxu0 0
      %541 = vmatpush.bf16.msra.mxu0 %v462
      %542 = vmatpush.bf16.msra.mxu0 %v461
      %543 = vmatmul.bf16.gmra.mxu0 %v533
      %v544 = vpop.f32.mrf.mxu0
      %v545 = vadd.f32 0.0, %v544
      %v546 = vpop.f32.mrf.mxu0
      %547 = vdwg.mxu0
      %v548 = vadd.f32 %v407, %v545
      %v549 = vxor.u32 %v548, 2147483648
      %v550 = vmul.f32 %v549, 1.442695
      %v551 = vpow.pop %v550
      %v552 = vadd.f32 %v551, 1.0
      %v553 = vrcp.pop %v552
      %v554 = vmul.f32 %v552, %v553
      %v555 = vsub.f32 1.0, %v554
      %v556 = vmul.f32 %v553, %v555
      %v557 = vadd.f32 %v553, %v556
      %vm558 = vweird.f32 %v552
      %vm559 = vweird.f32 %v553
      %vm560 = vmor %vm558, %vm559
      %v561 = vsel %vm560, %v553, %v557
      %v562 = vand.u32 2147483647, %v552
      %vm563 = vcmp.eq.f32.partialorder %v562, 8.507059e+37
      %v564 = vand.u32 %v552, 2147483648
      %v565 = vor.u32 1.1754944e-38, %v564
      %v566 = vsel %vm563, %v565, %v561
      %v567 = vmul.f32 1.0, %v566
      %v568 = vtanh.pop %v548
      %570 = vrot.lane.b32.xlu0 %v524, 32
      %v571 = vpop.permute.xlu0 %570
      %v573 = vmul.f32 %v567, %v571
      %575 = vrot.lane.b32.xlu0 %v568, 32
      %v576 = vpop.permute.xlu0 %575
      %v578 = vmul.f32 %v567, %v576
      %580 = vrot.lane.b32.xlu0 %v578, 32
      %v581 = vpop.permute.xlu0 %580
      %v583 = vadd.f32 %v573, %v581
      %v584 = vtanh.pop %v583
      %586 = vrot.lane.b32.xlu0 %v584, 32
      %v587 = vpop.permute.xlu0 %586
      %v589 = vmul.f32 %v567, %v587
      %v590 = vsub.f32 %v583, %v571
      %592 = vrot.lane.b32.xlu0 %v590, 96
      %v593 = vpop.permute.xlu0 %592
      %v595 = vmul.f32 %v424, %v593
      %v596 = vadd.f32 %v524, %v595
      %598 = vrot.lane.b32.xlu0 %v530, 64
      %v599 = vpop.permute.xlu0 %598
      %v601 = vsub.f32 %v589, %v599
      %603 = vrot.lane.b32.xlu0 %v601, 64
      %v604 = vpop.permute.xlu0 %603
      %v606 = vmul.f32 %v424, %v604
      %v607 = vadd.f32 %v530, %v606
      %609 = vrot.lane.b32.xlu0 %v589, 64
      %v610 = vpop.permute.xlu0 %609
      %v612 = vmul.f32 %v424, %v610
      %v613 = vpack.c.bf16 %v607, %v607
      %v615 = vsel %vm345, %v613, 0
      %617 = vmatpush.bf16.msra.mxu0 0
      %618 = vmatpush.bf16.msra.mxu0 0
      %619 = vmatpush.bf16.msra.mxu0 0
      %620 = vmatpush.bf16.msra.mxu0 0
      %621 = vmatpush.bf16.msra.mxu0 0
      %622 = vmatpush.bf16.msra.mxu0 0
      %623 = vmatpush.bf16.msra.mxu0 %v462
      %624 = vmatpush.bf16.msra.mxu0 %v461
      %625 = vmatmul.bf16.gmra.mxu0 %v615
      %v626 = vpop.f32.mrf.mxu0
      %v627 = vadd.f32 0.0, %v626
      %v628 = vpop.f32.mrf.mxu0
      %629 = vdwg.mxu0
      %v630 = vadd.f32 %v408, %v627
      %v631 = vxor.u32 %v630, 2147483648
      %v632 = vmul.f32 %v631, 1.442695
      %v633 = vpow.pop %v632
      %v634 = vadd.f32 %v633, 1.0
      %v635 = vrcp.pop %v634
      %v636 = vmul.f32 %v634, %v635
      %v637 = vsub.f32 1.0, %v636
      %v638 = vmul.f32 %v635, %v637
      %v639 = vadd.f32 %v635, %v638
      %vm640 = vweird.f32 %v634
      %vm641 = vweird.f32 %v635
      %vm642 = vmor %vm640, %vm641
      %v643 = vsel %vm642, %v635, %v639
      %v644 = vand.u32 2147483647, %v634
      %vm645 = vcmp.eq.f32.partialorder %v644, 8.507059e+37
      %v646 = vand.u32 %v634, 2147483648
      %v647 = vor.u32 1.1754944e-38, %v646
      %v648 = vsel %vm645, %v647, %v643
      %v649 = vmul.f32 1.0, %v648
      %v650 = vtanh.pop %v630
      %652 = vrot.lane.b32.xlu0 %v596, 32
      %v653 = vpop.permute.xlu0 %652
      %v655 = vmul.f32 %v649, %v653
      %657 = vrot.lane.b32.xlu0 %v650, 32
      %v658 = vpop.permute.xlu0 %657
      %v660 = vmul.f32 %v649, %v658
      %662 = vrot.lane.b32.xlu0 %v660, 32
      %v663 = vpop.permute.xlu0 %662
      %v665 = vadd.f32 %v655, %v663
      %v666 = vtanh.pop %v665
      %668 = vrot.lane.b32.xlu0 %v666, 32
      %v669 = vpop.permute.xlu0 %668
      %v671 = vmul.f32 %v649, %v669
      %v672 = vsub.f32 %v665, %v653
      %674 = vrot.lane.b32.xlu0 %v672, 96
      %v675 = vpop.permute.xlu0 %674
      %v677 = vmul.f32 %v428, %v675
      %v678 = vadd.f32 %v596, %v677
      %680 = vrot.lane.b32.xlu0 %v607, 64
      %v681 = vpop.permute.xlu0 %680
      %v683 = vsub.f32 %v671, %v681
      %685 = vrot.lane.b32.xlu0 %v683, 64
      %v686 = vpop.permute.xlu0 %685
      %v688 = vmul.f32 %v428, %v686
      %v689 = vadd.f32 %v607, %v688
      %691 = vrot.lane.b32.xlu0 %v671, 64
      %v692 = vpop.permute.xlu0 %691
      %v694 = vmul.f32 %v428, %v692
      %v695 = vpack.c.bf16 %v689, %v689
      %v697 = vsel %vm345, %v695, 0
      %699 = vmatpush.bf16.msra.mxu0 0
      %700 = vmatpush.bf16.msra.mxu0 0
      %701 = vmatpush.bf16.msra.mxu0 0
      %702 = vmatpush.bf16.msra.mxu0 0
      %703 = vmatpush.bf16.msra.mxu0 0
      %704 = vmatpush.bf16.msra.mxu0 0
      %705 = vmatpush.bf16.msra.mxu0 %v462
      %706 = vmatpush.bf16.msra.mxu0 %v461
      %707 = vmatmul.bf16.gmra.mxu0 %v697
      %v708 = vpop.f32.mrf.mxu0
      %v709 = vadd.f32 0.0, %v708
      %v710 = vpop.f32.mrf.mxu0
      %711 = vdwg.mxu0
      %v712 = vadd.f32 %v409, %v709
      %v713 = vxor.u32 %v712, 2147483648
      %v714 = vmul.f32 %v713, 1.442695
      %v715 = vpow.pop %v714
      %v716 = vadd.f32 %v715, 1.0
      %v717 = vrcp.pop %v716
      %v718 = vmul.f32 %v716, %v717
      %v719 = vsub.f32 1.0, %v718
      %v720 = vmul.f32 %v717, %v719
      %v721 = vadd.f32 %v717, %v720
      %vm722 = vweird.f32 %v716
      %vm723 = vweird.f32 %v717
      %vm724 = vmor %vm722, %vm723
      %v725 = vsel %vm724, %v717, %v721
      %v726 = vand.u32 2147483647, %v716
      %vm727 = vcmp.eq.f32.partialorder %v726, 8.507059e+37
      %v728 = vand.u32 %v716, 2147483648
      %v729 = vor.u32 1.1754944e-38, %v728
      %v730 = vsel %vm727, %v729, %v725
      %v731 = vmul.f32 1.0, %v730
      %v732 = vtanh.pop %v712
      %734 = vrot.lane.b32.xlu0 %v678, 32
      %v735 = vpop.permute.xlu0 %734
      %v737 = vmul.f32 %v731, %v735
      %739 = vrot.lane.b32.xlu0 %v732, 32
      %v740 = vpop.permute.xlu0 %739
      %v742 = vmul.f32 %v731, %v740
      %744 = vrot.lane.b32.xlu0 %v742, 32
      %v745 = vpop.permute.xlu0 %744
      %v747 = vadd.f32 %v737, %v745
      %v748 = vtanh.pop %v747
      %750 = vrot.lane.b32.xlu0 %v748, 32
      %v751 = vpop.permute.xlu0 %750
      %v753 = vmul.f32 %v731, %v751
      %v754 = vsub.f32 %v747, %v735
      %756 = vrot.lane.b32.xlu0 %v754, 96
      %v757 = vpop.permute.xlu0 %756
      %v759 = vmul.f32 %v432, %v757
      %v760 = vadd.f32 %v678, %v759
      %762 = vrot.lane.b32.xlu0 %v689, 64
      %v763 = vpop.permute.xlu0 %762
      %v765 = vsub.f32 %v753, %v763
      %767 = vrot.lane.b32.xlu0 %v765, 64
      %v768 = vpop.permute.xlu0 %767
      %v770 = vmul.f32 %v432, %v768
      %v771 = vadd.f32 %v689, %v770
      %773 = vrot.lane.b32.xlu0 %v753, 64
      %v774 = vpop.permute.xlu0 %773
      %v776 = vmul.f32 %v432, %v774
      %v777 = vpack.c.bf16 %v771, %v771
      %v779 = vsel %vm345, %v777, 0
      %781 = vmatpush.bf16.msra.mxu0 0
      %782 = vmatpush.bf16.msra.mxu0 0
      %783 = vmatpush.bf16.msra.mxu0 0
      %784 = vmatpush.bf16.msra.mxu0 0
      %785 = vmatpush.bf16.msra.mxu0 0
      %786 = vmatpush.bf16.msra.mxu0 0
      %787 = vmatpush.bf16.msra.mxu0 %v462
      %788 = vmatpush.bf16.msra.mxu0 %v461
      %789 = vmatmul.bf16.gmra.mxu0 %v779
      %v790 = vpop.f32.mrf.mxu0
      %v791 = vadd.f32 0.0, %v790
      %v792 = vpop.f32.mrf.mxu0
      %793 = vdwg.mxu0
      %v794 = vadd.f32 %v410, %v791
      %v795 = vxor.u32 %v794, 2147483648
      %v796 = vmul.f32 %v795, 1.442695
      %v797 = vpow.pop %v796
      %v798 = vadd.f32 %v797, 1.0
      %v799 = vrcp.pop %v798
      %v800 = vmul.f32 %v798, %v799
      %v801 = vsub.f32 1.0, %v800
      %v802 = vmul.f32 %v799, %v801
      %v803 = vadd.f32 %v799, %v802
      %vm804 = vweird.f32 %v798
      %vm805 = vweird.f32 %v799
      %vm806 = vmor %vm804, %vm805
      %v807 = vsel %vm806, %v799, %v803
      %v808 = vand.u32 2147483647, %v798
      %vm809 = vcmp.eq.f32.partialorder %v808, 8.507059e+37
      %v810 = vand.u32 %v798, 2147483648
      %v811 = vor.u32 1.1754944e-38, %v810
      %v812 = vsel %vm809, %v811, %v807
      %v813 = vmul.f32 1.0, %v812
      %v814 = vtanh.pop %v794
      %816 = vrot.lane.b32.xlu0 %v760, 32
      %v817 = vpop.permute.xlu0 %816
      %v819 = vmul.f32 %v813, %v817
      %821 = vrot.lane.b32.xlu0 %v814, 32
      %v822 = vpop.permute.xlu0 %821
      %v824 = vmul.f32 %v813, %v822
      %826 = vrot.lane.b32.xlu0 %v824, 32
      %v827 = vpop.permute.xlu0 %826
      %v829 = vadd.f32 %v819, %v827
      %v830 = vtanh.pop %v829
      %832 = vrot.lane.b32.xlu0 %v830, 32
      %v833 = vpop.permute.xlu0 %832
      %v835 = vmul.f32 %v813, %v833
      %v836 = vsub.f32 %v829, %v817
      %838 = vrot.lane.b32.xlu0 %v836, 96
      %v839 = vpop.permute.xlu0 %838
      %v841 = vmul.f32 %v436, %v839
      %v842 = vadd.f32 %v760, %v841
      %844 = vrot.lane.b32.xlu0 %v771, 64
      %v845 = vpop.permute.xlu0 %844
      %v847 = vsub.f32 %v835, %v845
      %849 = vrot.lane.b32.xlu0 %v847, 64
      %v850 = vpop.permute.xlu0 %849
      %v852 = vmul.f32 %v436, %v850
      %v853 = vadd.f32 %v771, %v852
      %855 = vrot.lane.b32.xlu0 %v835, 64
      %v856 = vpop.permute.xlu0 %855
      %v858 = vmul.f32 %v436, %v856
      %v859 = vpack.c.bf16 %v853, %v853
      %v861 = vsel %vm345, %v859, 0
      %863 = vmatpush.bf16.msra.mxu0 0
      %864 = vmatpush.bf16.msra.mxu0 0
      %865 = vmatpush.bf16.msra.mxu0 0
      %866 = vmatpush.bf16.msra.mxu0 0
      %867 = vmatpush.bf16.msra.mxu0 0
      %868 = vmatpush.bf16.msra.mxu0 0
      %869 = vmatpush.bf16.msra.mxu0 %v462
      %870 = vmatpush.bf16.msra.mxu0 %v461
      %871 = vmatmul.bf16.gmra.mxu0 %v861
      %v872 = vpop.f32.mrf.mxu0
      %v873 = vadd.f32 0.0, %v872
      %v874 = vpop.f32.mrf.mxu0
      %875 = vdwg.mxu0
      %v876 = vadd.f32 %v411, %v873
      %v877 = vxor.u32 %v876, 2147483648
      %v878 = vmul.f32 %v877, 1.442695
      %v879 = vpow.pop %v878
      %v880 = vadd.f32 %v879, 1.0
      %v881 = vrcp.pop %v880
      %v882 = vmul.f32 %v880, %v881
      %v883 = vsub.f32 1.0, %v882
      %v884 = vmul.f32 %v881, %v883
      %v885 = vadd.f32 %v881, %v884
      %vm886 = vweird.f32 %v880
      %vm887 = vweird.f32 %v881
      %vm888 = vmor %vm886, %vm887
      %v889 = vsel %vm888, %v881, %v885
      %v890 = vand.u32 2147483647, %v880
      %vm891 = vcmp.eq.f32.partialorder %v890, 8.507059e+37
      %v892 = vand.u32 %v880, 2147483648
      %v893 = vor.u32 1.1754944e-38, %v892
      %v894 = vsel %vm891, %v893, %v889
      %v895 = vmul.f32 1.0, %v894
      %v896 = vtanh.pop %v876
      %898 = vrot.lane.b32.xlu0 %v842, 32
      %v899 = vpop.permute.xlu0 %898
      %v901 = vmul.f32 %v895, %v899
      %903 = vrot.lane.b32.xlu0 %v896, 32
      %v904 = vpop.permute.xlu0 %903
      %v906 = vmul.f32 %v895, %v904
      %908 = vrot.lane.b32.xlu0 %v906, 32
      %v909 = vpop.permute.xlu0 %908
      %v911 = vadd.f32 %v901, %v909
      %v912 = vtanh.pop %v911
      %914 = vrot.lane.b32.xlu0 %v912, 32
      %v915 = vpop.permute.xlu0 %914
      %v917 = vmul.f32 %v895, %v915
      %v918 = vsub.f32 %v911, %v899
      %920 = vrot.lane.b32.xlu0 %v918, 96
      %v921 = vpop.permute.xlu0 %920
      %v923 = vmul.f32 %v440, %v921
      %v924 = vadd.f32 %v842, %v923
      %926 = vrot.lane.b32.xlu0 %v853, 64
      %v927 = vpop.permute.xlu0 %926
      %v929 = vsub.f32 %v917, %v927
      %931 = vrot.lane.b32.xlu0 %v929, 64
      %v932 = vpop.permute.xlu0 %931
      %v934 = vmul.f32 %v440, %v932
      %v935 = vadd.f32 %v853, %v934
      %937 = vrot.lane.b32.xlu0 %v917, 64
      %v938 = vpop.permute.xlu0 %937
      %v940 = vmul.f32 %v440, %v938
      %v941 = vpack.c.bf16 %v935, %v935
      %v943 = vsel %vm345, %v941, 0
      %945 = vmatpush.bf16.msra.mxu0 0
      %946 = vmatpush.bf16.msra.mxu0 0
      %947 = vmatpush.bf16.msra.mxu0 0
      %948 = vmatpush.bf16.msra.mxu0 0
      %949 = vmatpush.bf16.msra.mxu0 0
      %950 = vmatpush.bf16.msra.mxu0 0
      %951 = vmatpush.bf16.msra.mxu0 %v462
      %952 = vmatpush.bf16.msra.mxu0 %v461
      %953 = vmatmul.bf16.gmra.mxu0 %v943
      %v954 = vpop.f32.mrf.mxu0
      %v955 = vadd.f32 0.0, %v954
      %v956 = vpop.f32.mrf.mxu0
      %957 = vdwg.mxu0
      %v958 = vadd.f32 %v412, %v955
      %v959 = vxor.u32 %v958, 2147483648
      %v960 = vmul.f32 %v959, 1.442695
      %v961 = vpow.pop %v960
      %v962 = vadd.f32 %v961, 1.0
      %v963 = vrcp.pop %v962
      %v964 = vmul.f32 %v962, %v963
      %v965 = vsub.f32 1.0, %v964
      %v966 = vmul.f32 %v963, %v965
      %v967 = vadd.f32 %v963, %v966
      %vm968 = vweird.f32 %v962
      %vm969 = vweird.f32 %v963
      %vm970 = vmor %vm968, %vm969
      %v971 = vsel %vm970, %v963, %v967
      %v972 = vand.u32 2147483647, %v962
      %vm973 = vcmp.eq.f32.partialorder %v972, 8.507059e+37
      %v974 = vand.u32 %v962, 2147483648
      %v975 = vor.u32 1.1754944e-38, %v974
      %v976 = vsel %vm973, %v975, %v971
      %v977 = vmul.f32 1.0, %v976
      %v978 = vtanh.pop %v958
      %980 = vrot.lane.b32.xlu0 %v924, 32
      %v981 = vpop.permute.xlu0 %980
      %v983 = vmul.f32 %v977, %v981
      %985 = vrot.lane.b32.xlu0 %v978, 32
      %v986 = vpop.permute.xlu0 %985
      %v988 = vmul.f32 %v977, %v986
      %990 = vrot.lane.b32.xlu0 %v988, 32
      %v991 = vpop.permute.xlu0 %990
      %v993 = vadd.f32 %v983, %v991
      %v994 = vtanh.pop %v993
      %996 = vrot.lane.b32.xlu0 %v994, 32
      %v997 = vpop.permute.xlu0 %996
      %v999 = vmul.f32 %v977, %v997
      %v1000 = vsub.f32 %v993, %v981
      %1002 = vrot.lane.b32.xlu0 %v1000, 96
      %v1003 = vpop.permute.xlu0 %1002
      %v1005 = vmul.f32 %v444, %v1003
      %v1006 = vadd.f32 %v924, %v1005
      %1008 = vrot.lane.b32.xlu0 %v935, 64
      %v1009 = vpop.permute.xlu0 %1008
      %v1011 = vsub.f32 %v999, %v1009
      %1013 = vrot.lane.b32.xlu0 %v1011, 64
      %v1014 = vpop.permute.xlu0 %1013
      %v1016 = vmul.f32 %v444, %v1014
      %v1017 = vadd.f32 %v935, %v1016
      %1019 = vrot.lane.b32.xlu0 %v999, 64
      %v1020 = vpop.permute.xlu0 %1019
      %v1022 = vmul.f32 %v444, %v1020
      %v1023 = vpack.c.bf16 %v1017, %v1017
      %v1025 = vsel %vm345, %v1023, 0
      %1027 = vmatpush.bf16.msra.mxu0 0
      %1028 = vmatpush.bf16.msra.mxu0 0
      %1029 = vmatpush.bf16.msra.mxu0 0
      %1030 = vmatpush.bf16.msra.mxu0 0
      %1031 = vmatpush.bf16.msra.mxu0 0
      %1032 = vmatpush.bf16.msra.mxu0 0
      %1033 = vmatpush.bf16.msra.mxu0 %v462
      %1034 = vmatpush.bf16.msra.mxu0 %v461
      %1035 = vmatmul.bf16.gmra.mxu0 %v1025
      %v1036 = vpop.f32.mrf.mxu0
      %v1037 = vadd.f32 0.0, %v1036
      %v1038 = vpop.f32.mrf.mxu0
      %1039 = vdwg.mxu0
      %v1040 = vadd.f32 %v413, %v1037
      %v1041 = vxor.u32 %v1040, 2147483648
      %v1042 = vmul.f32 %v1041, 1.442695
      %v1043 = vpow.pop %v1042
      %v1044 = vadd.f32 %v1043, 1.0
      %v1045 = vrcp.pop %v1044
      %v1046 = vmul.f32 %v1044, %v1045
      %v1047 = vsub.f32 1.0, %v1046
      %v1048 = vmul.f32 %v1045, %v1047
      %v1049 = vadd.f32 %v1045, %v1048
      %vm1050 = vweird.f32 %v1044
      %vm1051 = vweird.f32 %v1045
      %vm1052 = vmor %vm1050, %vm1051
      %v1053 = vsel %vm1052, %v1045, %v1049
      %v1054 = vand.u32 2147483647, %v1044
      %vm1055 = vcmp.eq.f32.partialorder %v1054, 8.507059e+37
      %v1056 = vand.u32 %v1044, 2147483648
      %v1057 = vor.u32 1.1754944e-38, %v1056
      %v1058 = vsel %vm1055, %v1057, %v1053
      %v1059 = vmul.f32 1.0, %v1058
      %v1060 = vtanh.pop %v1040
      %1062 = vrot.lane.b32.xlu0 %v1006, 32
      %v1063 = vpop.permute.xlu0 %1062
      %v1065 = vmul.f32 %v1059, %v1063
      %1067 = vrot.lane.b32.xlu0 %v1060, 32
      %v1068 = vpop.permute.xlu0 %1067
      %v1070 = vmul.f32 %v1059, %v1068
      %1072 = vrot.lane.b32.xlu0 %v1070, 32
      %v1073 = vpop.permute.xlu0 %1072
      %v1075 = vadd.f32 %v1065, %v1073
      %v1076 = vtanh.pop %v1075
      %1078 = vrot.lane.b32.xlu0 %v1076, 32
      %v1079 = vpop.permute.xlu0 %1078
      %v1081 = vmul.f32 %v1059, %v1079
      %1083 = vrot.lane.b32.xlu0 %v1081, 64
      %v1084 = vpop.permute.xlu0 %1083
      %v1086 = vmul.f32 %v448, %v1084
      %v1087 = vsel %vm402, 1, 0
      %vm1088 = vcmp.eq.s32.totalorder %v1087, 1
      %v1089 = vsel %vm1088, %v529, %v1086
      %v1090 = vsel %vm1088, %v612, %v1022
      %v1091 = vsel %vm1088, %v694, %v940
      %v1092 = vsel %vm1088, %v776, %v858
      %v1093 = vsel %vm1088, %v858, %v776
      %v1094 = vsel %vm1088, %v940, %v694
      %v1095 = vsel %vm1088, %v1022, %v612
      %v1096 = vsel %vm1088, %v1086, %v529
      %1098 = vrot.lane.b32.xlu0 %v1090, 32
      %v1099 = vpop.permute.xlu0 %1098
      %1102 = vrot.lane.b32.xlu0 %v1091, 64
      %v1103 = vpop.permute.xlu0 %1102
      %1106 = vrot.lane.b32.xlu0 %v1092, 96
      %v1107 = vpop.permute.xlu0 %1106
      %1110 = vrot.lane.b32.xlu0 %v1094, 32
      %v1111 = vpop.permute.xlu0 %1110
      %1114 = vrot.lane.b32.xlu0 %v1095, 64
      %v1115 = vpop.permute.xlu0 %1114
      %1118 = vrot.lane.b32.xlu0 %v1096, 96
      %v1119 = vpop.permute.xlu0 %1118
      %v1121 = vsel %vm345, %v1089, %v1099
      %vm1122 = vcmask 523264
      %v1123 = vsel %vm1122, %v1121, %v1103
      %vm1124 = vcmask 785408
      %v1125 = vsel %vm1124, %v1123, %v1107
      %v1126 = vsel %vm345, %v1093, %v1111
      %v1127 = vsel %vm1122, %v1126, %v1115
      %v1128 = vsel %vm1124, %v1127, %v1119
      %v1129 = vpack.c.bf16 %v1128, %v1125
      %1130 = vst [vmem:[%s295] sm:$0xff] %v1129
      %p1131 = scmp.lt.s32.totalorder %s16, 1
      %s1132 = scalar_select %p1131, %s16, 1
      %s1133 = smul.addr %s1132, 2
      %s1134 = smul.addr %s1133, 4
      %s1135 = scalar_lea.vmem %s5, %s1134
      // Predicated region
      $region41: #{aoa_bert_forward.2} parent=39 // pred_check
        %p1136 = pneg %p164
      $region42: #{aoa_bert_forward.2} parent=39 // pred_check_branch
        %1138 = sbr.rel (%p1136) target = $region44
      $region43: #{aoa_bert_forward.2} parent=39 // pred_region
        _
      $region44: #{aoa_bert_forward.2} parent=39 // pred_fallthru
        _
    $region40: #{aoa_bert_forward.2} parent=5 // pred_fallthru
      _
    %p1139 = scmp.le.s32.totalorder 2, %s11
    // Predicated region
    $region45: #{aoa_bert_forward.2} parent=5 // pred_check
      %p1140 = pneg %p1139
    $region46: #{aoa_bert_forward.2} parent=5 // pred_check_branch
      %1142 = sbr.rel (%p1140) target = $region48
    $region47: #{aoa_bert_forward.2} parent=5 // pred_region
      %s1143 = ssub.s32 %s11, 2
      // Predicated region
      $region49: #{aoa_bert_forward.2} parent=47 // pred_check
        %p1144 = pneg %p170
      $region50: #{aoa_bert_forward.2} parent=47 // pred_check_branch
        %1146 = sbr.rel (%p1144) target = $region52
      $region51: #{aoa_bert_forward.2} parent=47 // pred_region
        %p1147 = scmp.lt.s32.totalorder %s17, 1
        %s1148 = scalar_select %p1147, %s17, 1
        %s1149 = smul.addr %s1148, 2
        %s1150 = smul.addr %s1149, 4
        %s1151 = scalar_lea.vmem %s5, %s1150
      $region52: #{aoa_bert_forward.2} parent=47 // pred_fallthru
        _
    $region48: #{aoa_bert_forward.2} parent=5 // pred_fallthru
      _
  $region6: #{aoa_bert_forward.2} parent=0 // loop_footer
    %s15 = sadd.s32 1, %s11
  $region7: #{aoa_bert_forward.2} parent=0 // loop_footer_branch
    %10 = sbr.rel target = $region3
  $region8: #{aoa_bert_forward.2} parent=0 // loop_exit
    _

// kernel: aoa_bert_forward.3
$region0: #{aoa_bert_forward.3}
  #allocation0 [shape = 'u32[]', space=smem, size = 0x4, offset = 0x4, fixed_abs, tag = 'smem constant byte address 0x4 - core index']
  #allocation1 [shape = 'u32[72,128]{1,0:T(1,128)}', space=vmem, size = 0x9000, scoped, tag = 'internal scratch']
  %s0 = inlined_call_operand.vmem [shape: bf16[2,8,8,32], index: 0, kind: input, shape index: {}]
  %s1 = inlined_call_operand.vmem [shape: f32[32,3], index: 1, kind: input, shape index: {}]
  %s2 = inlined_call_operand.vmem [shape: f32[1,3], index: 2, kind: input, shape index: {}]
  %s3 = inlined_call_operand.vmem [shape: f32[8,3], index: 3, kind: output, shape index: {}]
  %s4 = sld [smem:[#allocation0]]
  $region22: #{aoa_bert_forward.3} parent=0
    _
  %s6 = ssub.s32 1, %s4
  %s7 = scalar_select 0, %s6, %s4
  // Predicated region
  $region2: #{aoa_bert_forward.3} parent=0 // pred_check
    _
  $region3: #{aoa_bert_forward.3} parent=0 // pred_check_branch
    %9 = sbr.rel (0) target = $region5
  $region4: #{aoa_bert_forward.3} parent=0 // pred_region
    _
  $region5: #{aoa_bert_forward.3} parent=0 // pred_fallthru
    _
  // Predicated region
  $region6: #{aoa_bert_forward.3} parent=0 // pred_check
    _
  $region7: #{aoa_bert_forward.3} parent=0 // pred_check_branch
    %11 = sbr.rel (0) target = $region9
  $region8: #{aoa_bert_forward.3} parent=0 // pred_region
    _
  $region9: #{aoa_bert_forward.3} parent=0 // pred_fallthru
    _
  // Predicated region
  $region10: #{aoa_bert_forward.3} parent=0 // pred_check
    _
  $region11: #{aoa_bert_forward.3} parent=0 // pred_check_branch
    %13 = sbr.rel (0) target = $region13
  $region12: #{aoa_bert_forward.3} parent=0 // pred_region
    _
  $region13: #{aoa_bert_forward.3} parent=0 // pred_fallthru
    _
  %v15 = vld [vmem:[%s0] sm:$0xf]
  %v16 = vld [vmem:[%s0 + $0x4] sm:$0xf]
  %v17 = vld [vmem:[%s0 + $0x8] sm:$0xf]
  %v18 = vld [vmem:[%s0 + $0xc] sm:$0xf]
  %v19 = vld [vmem:[%s0 + $0x10] sm:$0xf]
  %v20 = vld [vmem:[%s0 + $0x14] sm:$0xf]
  %v21 = vld [vmem:[%s0 + $0x18] sm:$0xf]
  %v22 = vld [vmem:[%s0 + $0x1c] sm:$0xf]
  %s23 = scalar_lea.vmem %s0, 32
  %v24 = vld [vmem:[%s23] sm:$0x7]
  %v25 = vld [vmem:[%s23 + $0x4] sm:$0x7]
  %v26 = vld [vmem:[%s23 + $0x8] sm:$0x7]
  %v27 = vld [vmem:[%s23 + $0xc] sm:$0x7]
  %v28 = vld [vmem:[%s23 + $0x10] sm:$0x7]
  %v29 = vld [vmem:[%s23 + $0x14] sm:$0x7]
  %v30 = vld [vmem:[%s23 + $0x18] sm:$0x7]
  %v31 = vld [vmem:[%s23 + $0x1c] sm:$0x7]
  %vm32 = vcmask 261120
  %v34 = vsel %vm32, %v15, 0
  %v37 = vsel %vm32, %v24, 0
  %39 = vmatpush.bf16.xpose.msra.mxu0 0
  %40 = vmatpush.bf16.xpose.msra.mxu0 0
  %41 = vmatpush.bf16.xpose.msra.mxu0 0
  %42 = vmatpush.bf16.xpose.msra.mxu0 0
  %43 = vmatpush.bf16.xpose.msra.mxu0 0
  %44 = vmatpush.bf16.xpose.msra.mxu0 0
  %45 = vmatpush.bf16.xpose.msra.mxu0 0
  %46 = vmatpush.bf16.xpose.msra.mxu0 %v37
  %47 = vmatmul.bf16.gmra.mxu0 %v34
  %v48 = vpop.f32.mrf.mxu0
  %v49 = vadd.f32 0.0, %v48
  %v50 = vpop.f32.mrf.mxu0
  %51 = vdwg.mxu0
  %v53 = vsel %vm32, %v16, 0
  %v56 = vsel %vm32, %v25, 0
  %58 = vmatpush.bf16.xpose.msra.mxu0 0
  %59 = vmatpush.bf16.xpose.msra.mxu0 0
  %60 = vmatpush.bf16.xpose.msra.mxu0 0
  %61 = vmatpush.bf16.xpose.msra.mxu0 0
  %62 = vmatpush.bf16.xpose.msra.mxu0 0
  %63 = vmatpush.bf16.xpose.msra.mxu0 0
  %64 = vmatpush.bf16.xpose.msra.mxu0 0
  %65 = vmatpush.bf16.xpose.msra.mxu0 %v56
  %66 = vmatmul.bf16.gmra.mxu0 %v53
  %v67 = vpop.f32.mrf.mxu0
  %v68 = vadd.f32 0.0, %v67
  %v69 = vpop.f32.mrf.mxu0
  %70 = vdwg.mxu0
  %v72 = vsel %vm32, %v17, 0
  %v75 = vsel %vm32, %v26, 0
  %77 = vmatpush.bf16.xpose.msra.mxu0 0
  %78 = vmatpush.bf16.xpose.msra.mxu0 0
  %79 = vmatpush.bf16.xpose.msra.mxu0 0
  %80 = vmatpush.bf16.xpose.msra.mxu0 0
  %81 = vmatpush.bf16.xpose.msra.mxu0 0
  %82 = vmatpush.bf16.xpose.msra.mxu0 0
  %83 = vmatpush.bf16.xpose.msra.mxu0 0
  %84 = vmatpush.bf16.xpose.msra.mxu0 %v75
  %85 = vmatmul.bf16.gmra.mxu0 %v72
  %v86 = vpop.f32.mrf.mxu0
  %v87 = vadd.f32 0.0, %v86
  %v88 = vpop.f32.mrf.mxu0
  %89 = vdwg.mxu0
  %v91 = vsel %vm32, %v18, 0
  %v94 = vsel %vm32, %v27, 0
  %96 = vmatpush.bf16.xpose.msra.mxu0 0
  %97 = vmatpush.bf16.xpose.msra.mxu0 0
  %98 = vmatpush.bf16.xpose.msra.mxu0 0
  %99 = vmatpush.bf16.xpose.msra.mxu0 0
  %100 = vmatpush.bf16.xpose.msra.mxu0 0
  %101 = vmatpush.bf16.xpose.msra.mxu0 0
  %102 = vmatpush.bf16.xpose.msra.mxu0 0
  %103 = vmatpush.bf16.xpose.msra.mxu0 %v94
  %104 = vmatmul.bf16.gmra.mxu0 %v91
  %v105 = vpop.f32.mrf.mxu0
  %v106 = vadd.f32 0.0, %v105
  %v107 = vpop.f32.mrf.mxu0
  %108 = vdwg.mxu0
  %v110 = vsel %vm32, %v19, 0
  %v113 = vsel %vm32, %v28, 0
  %115 = vmatpush.bf16.xpose.msra.mxu0 0
  %116 = vmatpush.bf16.xpose.msra.mxu0 0
  %117 = vmatpush.bf16.xpose.msra.mxu0 0
  %118 = vmatpush.bf16.xpose.msra.mxu0 0
  %119 = vmatpush.bf16.xpose.msra.mxu0 0
  %120 = vmatpush.bf16.xpose.msra.mxu0 0
  %121 = vmatpush.bf16.xpose.msra.mxu0 0
  %122 = vmatpush.bf16.xpose.msra.mxu0 %v113
  %123 = vmatmul.bf16.gmra.mxu0 %v110
  %v124 = vpop.f32.mrf.mxu0
  %v125 = vadd.f32 0.0, %v124
  %v126 = vpop.f32.mrf.mxu0
  %127 = vdwg.mxu0
  %v129 = vsel %vm32, %v20, 0
  %v132 = vsel %vm32, %v29, 0
  %134 = vmatpush.bf16.xpose.msra.mxu0 0
  %135 = vmatpush.bf16.xpose.msra.mxu0 0
  %136 = vmatpush.bf16.xpose.msra.mxu0 0
  %137 = vmatpush.bf16.xpose.msra.mxu0 0
  %138 = vmatpush.bf16.xpose.msra.mxu0 0
  %139 = vmatpush.bf16.xpose.msra.mxu0 0
  %140 = vmatpush.bf16.xpose.msra.mxu0 0
  %141 = vmatpush.bf16.xpose.msra.mxu0 %v132
  %142 = vmatmul.bf16.gmra.mxu0 %v129
  %v143 = vpop.f32.mrf.mxu0
  %v144 = vadd.f32 0.0, %v143
  %v145 = vpop.f32.mrf.mxu0
  %146 = vdwg.mxu0
  %v148 = vsel %vm32, %v21, 0
  %v151 = vsel %vm32, %v30, 0
  %153 = vmatpush.bf16.xpose.msra.mxu0 0
  %154 = vmatpush.bf16.xpose.msra.mxu0 0
  %155 = vmatpush.bf16.xpose.msra.mxu0 0
  %156 = vmatpush.bf16.xpose.msra.mxu0 0
  %157 = vmatpush.bf16.xpose.msra.mxu0 0
  %158 = vmatpush.bf16.xpose.msra.mxu0 0
  %159 = vmatpush.bf16.xpose.msra.mxu0 0
  %160 = vmatpush.bf16.xpose.msra.mxu0 %v151
  %161 = vmatmul.bf16.gmra.mxu0 %v148
  %v162 = vpop.f32.mrf.mxu0
  %v163 = vadd.f32 0.0, %v162
  %v164 = vpop.f32.mrf.mxu0
  %165 = vdwg.mxu0
  %v167 = vsel %vm32, %v22, 0
  %v170 = vsel %vm32, %v31, 0
  %172 = vmatpush.bf16.xpose.msra.mxu0 0
  %173 = vmatpush.bf16.xpose.msra.mxu0 0
  %174 = vmatpush.bf16.xpose.msra.mxu0 0
  %175 = vmatpush.bf16.xpose.msra.mxu0 0
  %176 = vmatpush.bf16.xpose.msra.mxu0 0
  %177 = vmatpush.bf16.xpose.msra.mxu0 0
  %178 = vmatpush.bf16.xpose.msra.mxu0 0
  %179 = vmatpush.bf16.xpose.msra.mxu0 %v170
  %180 = vmatmul.bf16.gmra.mxu0 %v167
  %v181 = vpop.f32.mrf.mxu0
  %v182 = vadd.f32 0.0, %v181
  %v183 = vpop.f32.mrf.mxu0
  %184 = vdwg.mxu0
  %185 = vmatpush.bf16.xpose.msra.mxu0 0
  %186 = vmatpush.bf16.xpose.msra.mxu0 0
  %187 = vmatpush.bf16.xpose.msra.mxu0 0
  %188 = vmatpush.bf16.xpose.msra.mxu0 0
  %189 = vmatpush.bf16.xpose.msra.mxu0 0
  %190 = vmatpush.bf16.xpose.msra.mxu0 0
  %191 = vmatpush.bf16.xpose.msra.mxu0 0
  %192 = vmatpush.bf16.xpose.msra.mxu0 %v34
  %193 = vmatmul.bf16.gmra.mxu0 %v37
  %v194 = vpop.f32.mrf.mxu0
  %v195 = vadd.f32 0.0, %v194
  %v196 = vpop.f32.mrf.mxu0
  %197 = vdwg.mxu0
  %198 = vmatpush.bf16.xpose.msra.mxu0 0
  %199 = vmatpush.bf16.xpose.msra.mxu0 0
  %200 = vmatpush.bf16.xpose.msra.mxu0 0
  %201 = vmatpush.bf16.xpose.msra.mxu0 0
  %202 = vmatpush.bf16.xpose.msra.mxu0 0
  %203 = vmatpush.bf16.xpose.msra.mxu0 0
  %204 = vmatpush.bf16.xpose.msra.mxu0 0
  %205 = vmatpush.bf16.xpose.msra.mxu0 %v53
  %206 = vmatmul.bf16.gmra.mxu0 %v56
  %v207 = vpop.f32.mrf.mxu0
  %v208 = vadd.f32 0.0, %v207
  %v209 = vpop.f32.mrf.mxu0
  %210 = vdwg.mxu0
  %211 = vmatpush.bf16.xpose.msra.mxu0 0
  %212 = vmatpush.bf16.xpose.msra.mxu0 0
  %213 = vmatpush.bf16.xpose.msra.mxu0 0
  %214 = vmatpush.bf16.xpose.msra.mxu0 0
  %215 = vmatpush.bf16.xpose.msra.mxu0 0
  %216 = vmatpush.bf16.xpose.msra.mxu0 0
  %217 = vmatpush.bf16.xpose.msra.mxu0 0
  %218 = vmatpush.bf16.xpose.msra.mxu0 %v72
  %219 = vmatmul.bf16.gmra.mxu0 %v75
  %v220 = vpop.f32.mrf.mxu0
  %v221 = vadd.f32 0.0, %v220
  %v222 = vpop.f32.mrf.mxu0
  %223 = vdwg.mxu0
  %224 = vmatpush.bf16.xpose.msra.mxu0 0
  %225 = vmatpush.bf16.xpose.msra.mxu0 0
  %226 = vmatpush.bf16.xpose.msra.mxu0 0
  %227 = vmatpush.bf16.xpose.msra.mxu0 0
  %228 = vmatpush.bf16.xpose.msra.mxu0 0
  %229 = vmatpush.bf16.xpose.msra.mxu0 0
  %230 = vmatpush.bf16.xpose.msra.mxu0 0
  %231 = vmatpush.bf16.xpose.msra.mxu0 %v91
  %232 = vmatmul.bf16.gmra.mxu0 %v94
  %v233 = vpop.f32.mrf.mxu0
  %v234 = vadd.f32 0.0, %v233
  %v235 = vpop.f32.mrf.mxu0
  %236 = vdwg.mxu0
  %237 = vmatpush.bf16.xpose.msra.mxu0 0
  %238 = vmatpush.bf16.xpose.msra.mxu0 0
  %239 = vmatpush.bf16.xpose.msra.mxu0 0
  %240 = vmatpush.bf16.xpose.msra.mxu0 0
  %241 = vmatpush.bf16.xpose.msra.mxu0 0
  %242 = vmatpush.bf16.xpose.msra.mxu0 0
  %243 = vmatpush.bf16.xpose.msra.mxu0 0
  %244 = vmatpush.bf16.xpose.msra.mxu0 %v110
  %245 = vmatmul.bf16.gmra.mxu0 %v113
  %v246 = vpop.f32.mrf.mxu0
  %v247 = vadd.f32 0.0, %v246
  %v248 = vpop.f32.mrf.mxu0
  %249 = vdwg.mxu0
  %250 = vmatpush.bf16.xpose.msra.mxu0 0
  %251 = vmatpush.bf16.xpose.msra.mxu0 0
  %252 = vmatpush.bf16.xpose.msra.mxu0 0
  %253 = vmatpush.bf16.xpose.msra.mxu0 0
  %254 = vmatpush.bf16.xpose.msra.mxu0 0
  %255 = vmatpush.bf16.xpose.msra.mxu0 0
  %256 = vmatpush.bf16.xpose.msra.mxu0 0
  %257 = vmatpush.bf16.xpose.msra.mxu0 %v129
  %258 = vmatmul.bf16.gmra.mxu0 %v132
  %v259 = vpop.f32.mrf.mxu0
  %v260 = vadd.f32 0.0, %v259
  %v261 = vpop.f32.mrf.mxu0
  %262 = vdwg.mxu0
  %263 = vmatpush.bf16.xpose.msra.mxu0 0
  %264 = vmatpush.bf16.xpose.msra.mxu0 0
  %265 = vmatpush.bf16.xpose.msra.mxu0 0
  %266 = vmatpush.bf16.xpose.msra.mxu0 0
  %267 = vmatpush.bf16.xpose.msra.mxu0 0
  %268 = vmatpush.bf16.xpose.msra.mxu0 0
  %269 = vmatpush.bf16.xpose.msra.mxu0 0
  %270 = vmatpush.bf16.xpose.msra.mxu0 %v148
  %271 = vmatmul.bf16.gmra.mxu0 %v151
  %v272 = vpop.f32.mrf.mxu0
  %v273 = vadd.f32 0.0, %v272
  %v274 = vpop.f32.mrf.mxu0
  %275 = vdwg.mxu0
  %276 = vmatpush.bf16.xpose.msra.mxu0 0
  %277 = vmatpush.bf16.xpose.msra.mxu0 0
  %278 = vmatpush.bf16.xpose.msra.mxu0 0
  %279 = vmatpush.bf16.xpose.msra.mxu0 0
  %280 = vmatpush.bf16.xpose.msra.mxu0 0
  %281 = vmatpush.bf16.xpose.msra.mxu0 0
  %282 = vmatpush.bf16.xpose.msra.mxu0 0
  %283 = vmatpush.bf16.xpose.msra.mxu0 %v167
  %284 = vmatmul.bf16.gmra.mxu0 %v170
  %v285 = vpop.f32.mrf.mxu0
  %v286 = vadd.f32 0.0, %v285
  %v287 = vpop.f32.mrf.mxu0
  %288 = vdwg.mxu0
  %vm289 = vcmask 48128
  %v290 = vsel %vm289, %v49, -inf
  %291 = vmax.xlane.f32.xlu0 %v290
  %v292 = vpop.xlane.xlu0 %291
  %v293 = vsel %vm289, %v68, -inf
  %294 = vmax.xlane.f32.xlu0 %v293
  %v295 = vpop.xlane.xlu0 %294
  %v296 = vsel %vm289, %v87, -inf
  %297 = vmax.xlane.f32.xlu0 %v296
  %v298 = vpop.xlane.xlu0 %297
  %v299 = vsel %vm289, %v106, -inf
  %300 = vmax.xlane.f32.xlu0 %v299
  %v301 = vpop.xlane.xlu0 %300
  %v302 = vsel %vm289, %v125, -inf
  %303 = vmax.xlane.f32.xlu0 %v302
  %v304 = vpop.xlane.xlu0 %303
  %v305 = vsel %vm289, %v144, -inf
  %306 = vmax.xlane.f32.xlu0 %v305
  %v307 = vpop.xlane.xlu0 %306
  %v308 = vsel %vm289, %v163, -inf
  %309 = vmax.xlane.f32.xlu0 %v308
  %v310 = vpop.xlane.xlu0 %309
  %v311 = vsel %vm289, %v182, -inf
  %312 = vmax.xlane.f32.xlu0 %v311
  %v313 = vpop.xlane.xlu0 %312
  %v314 = vsub.f32 %v49, %v292
  %v315 = vsub.f32 %v68, %v295
  %v316 = vsub.f32 %v87, %v298
  %v317 = vsub.f32 %v106, %v301
  %v318 = vsub.f32 %v125, %v304
  %v319 = vsub.f32 %v144, %v307
  %v320 = vsub.f32 %v163, %v310
  %v321 = vsub.f32 %v182, %v313
  %v322 = vmul.f32 %v314, 1.442695
  %v323 = vpow.pop %v322
  %v324 = vmul.f32 %v315, 1.442695
  %v325 = vpow.pop %v324
  %v326 = vmul.f32 %v316, 1.442695
  %v327 = vpow.pop %v326
  %v328 = vmul.f32 %v317, 1.442695
  %v329 = vpow.pop %v328
  %v330 = vmul.f32 %v318, 1.442695
  %v331 = vpow.pop %v330
  %v332 = vmul.f32 %v319, 1.442695
  %v333 = vpow.pop %v332
  %v334 = vmul.f32 %v320, 1.442695
  %v335 = vpow.pop %v334
  %v336 = vmul.f32 %v321, 1.442695
  %v337 = vpow.pop %v336
  %v338 = vsel %vm289, %v323, 0.0
  %339 = vadd.xlane.f32.xlu0 %v338
  %v340 = vpop.xlane.xlu0 %339
  %v341 = vsel %vm289, %v325, 0.0
  %342 = vadd.xlane.f32.xlu0 %v341
  %v343 = vpop.xlane.xlu0 %342
  %v344 = vsel %vm289, %v327, 0.0
  %345 = vadd.xlane.f32.xlu0 %v344
  %v346 = vpop.xlane.xlu0 %345
  %v347 = vsel %vm289, %v329, 0.0
  %348 = vadd.xlane.f32.xlu0 %v347
  %v349 = vpop.xlane.xlu0 %348
  %v350 = vsel %vm289, %v331, 0.0
  %351 = vadd.xlane.f32.xlu0 %v350
  %v352 = vpop.xlane.xlu0 %351
  %v353 = vsel %vm289, %v333, 0.0
  %354 = vadd.xlane.f32.xlu0 %v353
  %v355 = vpop.xlane.xlu0 %354
  %v356 = vsel %vm289, %v335, 0.0
  %357 = vadd.xlane.f32.xlu0 %v356
  %v358 = vpop.xlane.xlu0 %357
  %v359 = vsel %vm289, %v337, 0.0
  %360 = vadd.xlane.f32.xlu0 %v359
  %v361 = vpop.xlane.xlu0 %360
  %v362 = vrcp.pop %v340
  %v363 = vrcp.pop %v343
  %v364 = vrcp.pop %v346
  %v365 = vrcp.pop %v349
  %v366 = vrcp.pop %v352
  %v367 = vrcp.pop %v355
  %v368 = vrcp.pop %v358
  %v369 = vrcp.pop %v361
  %v370 = vmul.f32 %v323, %v362
  %v371 = vmul.f32 %v325, %v363
  %v372 = vmul.f32 %v327, %v364
  %v373 = vmul.f32 %v329, %v365
  %v374 = vmul.f32 %v331, %v366
  %v375 = vmul.f32 %v333, %v367
  %v376 = vmul.f32 %v335, %v368
  %v377 = vmul.f32 %v337, %v369
  %vm378 = vcmask 62464
  %v379 = vsel %vm378, %v195, -inf
  %380 = vmax.xlane.f32.xlu0 %v379
  %v381 = vpop.xlane.xlu0 %380
  %v382 = vsel %vm378, %v208, -inf
  %383 = vmax.xlane.f32.xlu0 %v382
  %v384 = vpop.xlane.xlu0 %383
  %v385 = vsel %vm378, %v221, -inf
  %386 = vmax.xlane.f32.xlu0 %v385
  %v387 = vpop.xlane.xlu0 %386
  %v388 = vsel %vm378, %v234, -inf
  %389 = vmax.xlane.f32.xlu0 %v388
  %v390 = vpop.xlane.xlu0 %389
  %v391 = vsel %vm378, %v247, -inf
  %392 = vmax.xlane.f32.xlu0 %v391
  %v393 = vpop.xlane.xlu0 %392
  %v394 = vsel %vm378, %v260, -inf
  %395 = vmax.xlane.f32.xlu0 %v394
  %v396 = vpop.xlane.xlu0 %395
  %v397 = vsel %vm378, %v273, -inf
  %398 = vmax.xlane.f32.xlu0 %v397
  %v399 = vpop.xlane.xlu0 %398
  %v400 = vsel %vm378, %v286, -inf
  %401 = vmax.xlane.f32.xlu0 %v400
  %v402 = vpop.xlane.xlu0 %401
  %v403 = vsub.f32 %v195, %v381
  %v404 = vsub.f32 %v208, %v384
  %v405 = vsub.f32 %v221, %v387
  %v406 = vsub.f32 %v234, %v390
  %v407 = vsub.f32 %v247, %v393
  %v408 = vsub.f32 %v260, %v396
  %v409 = vsub.f32 %v273, %v399
  %v410 = vsub.f32 %v286, %v402
  %v411 = vmul.f32 %v403, 1.442695
  %v412 = vpow.pop %v411
  %v413 = vmul.f32 %v404, 1.442695
  %v414 = vpow.pop %v413
  %v415 = vmul.f32 %v405, 1.442695
  %v416 = vpow.pop %v415
  %v417 = vmul.f32 %v406, 1.442695
  %v418 = vpow.pop %v417
  %v419 = vmul.f32 %v407, 1.442695
  %v420 = vpow.pop %v419
  %v421 = vmul.f32 %v408, 1.442695
  %v422 = vpow.pop %v421
  %v423 = vmul.f32 %v409, 1.442695
  %v424 = vpow.pop %v423
  %v425 = vmul.f32 %v410, 1.442695
  %v426 = vpow.pop %v425
  %v427 = vsel %vm378, %v412, 0.0
  %428 = vadd.xlane.f32.xlu0 %v427
  %v429 = vpop.xlane.xlu0 %428
  %v430 = vsel %vm378, %v414, 0.0
  %431 = vadd.xlane.f32.xlu0 %v430
  %v432 = vpop.xlane.xlu0 %431
  %v433 = vsel %vm378, %v416, 0.0
  %434 = vadd.xlane.f32.xlu0 %v433
  %v435 = vpop.xlane.xlu0 %434
  %v436 = vsel %vm378, %v418, 0.0
  %437 = vadd.xlane.f32.xlu0 %v436
  %v438 = vpop.xlane.xlu0 %437
  %v439 = vsel %vm378, %v420, 0.0
  %440 = vadd.xlane.f32.xlu0 %v439
  %v441 = vpop.xlane.xlu0 %440
  %v442 = vsel %vm378, %v422, 0.0
  %443 = vadd.xlane.f32.xlu0 %v442
  %v444 = vpop.xlane.xlu0 %443
  %v445 = vsel %vm378, %v424, 0.0
  %446 = vadd.xlane.f32.xlu0 %v445
  %v447 = vpop.xlane.xlu0 %446
  %v448 = vsel %vm378, %v426, 0.0
  %449 = vadd.xlane.f32.xlu0 %v448
  %v450 = vpop.xlane.xlu0 %449
  %v451 = vrcp.pop %v429
  %v452 = vrcp.pop %v432
  %v453 = vrcp.pop %v435
  %v454 = vrcp.pop %v438
  %v455 = vrcp.pop %v441
  %v456 = vrcp.pop %v444
  %v457 = vrcp.pop %v447
  %v458 = vrcp.pop %v450
  %v459 = vmul.f32 %v412, %v451
  %v460 = vmul.f32 %v414, %v452
  %v461 = vmul.f32 %v416, %v453
  %v462 = vmul.f32 %v418, %v454
  %v463 = vmul.f32 %v420, %v455
  %v464 = vmul.f32 %v422, %v456
  %v465 = vmul.f32 %v424, %v457
  %v466 = vmul.f32 %v426, %v458
  %v467 = vsel %vm289, %v370, 0.0
  %v468 = vrot.slane %v467, 4
  %v469 = vadd.f32 %v467, %v468
  %v470 = vrot.slane %v469, 2
  %v471 = vadd.f32 %v469, %v470
  %v472 = vrot.slane %v471, 1
  %v473 = vadd.f32 %v471, %v472
  %v474 = vsel %vm289, %v371, 0.0
  %v475 = vrot.slane %v474, 4
  %v476 = vadd.f32 %v474, %v475
  %v477 = vrot.slane %v476, 2
  %v478 = vadd.f32 %v476, %v477
  %v479 = vrot.slane %v478, 1
  %v480 = vadd.f32 %v478, %v479
  %v481 = vsel %vm289, %v372, 0.0
  %v482 = vrot.slane %v481, 4
  %v483 = vadd.f32 %v481, %v482
  %v484 = vrot.slane %v483, 2
  %v485 = vadd.f32 %v483, %v484
  %v486 = vrot.slane %v485, 1
  %v487 = vadd.f32 %v485, %v486
  %v488 = vsel %vm289, %v373, 0.0
  %v489 = vrot.slane %v488, 4
  %v490 = vadd.f32 %v488, %v489
  %v491 = vrot.slane %v490, 2
  %v492 = vadd.f32 %v490, %v491
  %v493 = vrot.slane %v492, 1
  %v494 = vadd.f32 %v492, %v493
  %v495 = vsel %vm289, %v374, 0.0
  %v496 = vrot.slane %v495, 4
  %v497 = vadd.f32 %v495, %v496
  %v498 = vrot.slane %v497, 2
  %v499 = vadd.f32 %v497, %v498
  %v500 = vrot.slane %v499, 1
  %v501 = vadd.f32 %v499, %v500
  %v502 = vsel %vm289, %v375, 0.0
  %v503 = vrot.slane %v502, 4
  %v504 = vadd.f32 %v502, %v503
  %v505 = vrot.slane %v504, 2
  %v506 = vadd.f32 %v504, %v505
  %v507 = vrot.slane %v506, 1
  %v508 = vadd.f32 %v506, %v507
  %v509 = vsel %vm289, %v376, 0.0
  %v510 = vrot.slane %v509, 4
  %v511 = vadd.f32 %v509, %v510
  %v512 = vrot.slane %v511, 2
  %v513 = vadd.f32 %v511, %v512
  %v514 = vrot.slane %v513, 1
  %v515 = vadd.f32 %v513, %v514
  %v516 = vsel %vm289, %v377, 0.0
  %v517 = vrot.slane %v516, 4
  %v518 = vadd.f32 %v516, %v517
  %v519 = vrot.slane %v518, 2
  %v520 = vadd.f32 %v518, %v519
  %v521 = vrot.slane %v520, 1
  %v522 = vadd.f32 %v520, %v521
  %v523 = vrcp.pop 8.0
  %v524 = vmul.f32 8.0, %v523
  %v525 = vsub.f32 1.0, %v524
  %v526 = vmul.f32 %v523, %v525
  %v527 = vadd.f32 %v523, %v526
  %vm528 = vweird.f32 %v523
  %v529 = vsel %vm528, %v523, %v527
  %v530 = vmul.f32 %v473, %v529
  %v531 = vmul.f32 %v480, %v529
  %v532 = vmul.f32 %v487, %v529
  %v533 = vmul.f32 %v494, %v529
  %v534 = vmul.f32 %v501, %v529
  %v535 = vmul.f32 %v508, %v529
  %v536 = vmul.f32 %v515, %v529
  %v537 = vmul.f32 %v522, %v529
  %v538 = vlaneseq
  %v539 = vshrl.u32 %v538, 7
  %541 = vset.pattern.permute.xlu0 %v539
  %542 = vperm.xlu0 %541, %v530
  %v543 = vpop.permute.xlu0 %542
  %v544 = vlaneseq
  %v545 = vshrl.u32 %v544, 7
  %547 = vset.pattern.permute.xlu0 %v545
  %548 = vperm.xlu0 %547, %v531
  %v549 = vpop.permute.xlu0 %548
  %v550 = vlaneseq
  %v551 = vshrl.u32 %v550, 7
  %553 = vset.pattern.permute.xlu0 %v551
  %554 = vperm.xlu0 %553, %v532
  %v555 = vpop.permute.xlu0 %554
  %v556 = vlaneseq
  %v557 = vshrl.u32 %v556, 7
  %559 = vset.pattern.permute.xlu0 %v557
  %560 = vperm.xlu0 %559, %v533
  %v561 = vpop.permute.xlu0 %560
  %v562 = vlaneseq
  %v563 = vshrl.u32 %v562, 7
  %565 = vset.pattern.permute.xlu0 %v563
  %566 = vperm.xlu0 %565, %v534
  %v567 = vpop.permute.xlu0 %566
  %v568 = vlaneseq
  %v569 = vshrl.u32 %v568, 7
  %571 = vset.pattern.permute.xlu0 %v569
  %572 = vperm.xlu0 %571, %v535
  %v573 = vpop.permute.xlu0 %572
  %v574 = vlaneseq
  %v575 = vshrl.u32 %v574, 7
  %577 = vset.pattern.permute.xlu0 %v575
  %578 = vperm.xlu0 %577, %v536
  %v579 = vpop.permute.xlu0 %578
  %v580 = vlaneseq
  %v581 = vshrl.u32 %v580, 7
  %583 = vset.pattern.permute.xlu0 %v581
  %584 = vperm.xlu0 %583, %v537
  %v585 = vpop.permute.xlu0 %584
  %v586 = vmul.f32 %v459, %v543
  %v587 = vmul.f32 %v460, %v549
  %v588 = vmul.f32 %v461, %v555
  %v589 = vmul.f32 %v462, %v561
  %v590 = vmul.f32 %v463, %v567
  %v591 = vmul.f32 %v464, %v573
  %v592 = vmul.f32 %v465, %v579
  %v593 = vmul.f32 %v466, %v585
  %v594 = vsel %vm378, %v586, 0.0
  %v595 = vrot.slane %v594, 4
  %v596 = vadd.f32 %v594, %v595
  %v597 = vrot.slane %v596, 2
  %v598 = vadd.f32 %v596, %v597
  %v599 = vrot.slane %v598, 1
  %v600 = vadd.f32 %v598, %v599
  %v601 = vsel %vm378, %v587, 0.0
  %v602 = vrot.slane %v601, 4
  %v603 = vadd.f32 %v601, %v602
  %v604 = vrot.slane %v603, 2
  %v605 = vadd.f32 %v603, %v604
  %v606 = vrot.slane %v605, 1
  %v607 = vadd.f32 %v605, %v606
  %v608 = vsel %vm378, %v588, 0.0
  %v609 = vrot.slane %v608, 4
  %v610 = vadd.f32 %v608, %v609
  %v611 = vrot.slane %v610, 2
  %v612 = vadd.f32 %v610, %v611
  %v613 = vrot.slane %v612, 1
  %v614 = vadd.f32 %v612, %v613
  %v615 = vsel %vm378, %v589, 0.0
  %v616 = vrot.slane %v615, 4
  %v617 = vadd.f32 %v615, %v616
  %v618 = vrot.slane %v617, 2
  %v619 = vadd.f32 %v617, %v618
  %v620 = vrot.slane %v619, 1
  %v621 = vadd.f32 %v619, %v620
  %v622 = vsel %vm378, %v590, 0.0
  %v623 = vrot.slane %v622, 4
  %v624 = vadd.f32 %v622, %v623
  %v625 = vrot.slane %v624, 2
  %v626 = vadd.f32 %v624, %v625
  %v627 = vrot.slane %v626, 1
  %v628 = vadd.f32 %v626, %v627
  %v629 = vsel %vm378, %v591, 0.0
  %v630 = vrot.slane %v629, 4
  %v631 = vadd.f32 %v629, %v630
  %v632 = vrot.slane %v631, 2
  %v633 = vadd.f32 %v631, %v632
  %v634 = vrot.slane %v633, 1
  %v635 = vadd.f32 %v633, %v634
  %v636 = vsel %vm378, %v592, 0.0
  %v637 = vrot.slane %v636, 4
  %v638 = vadd.f32 %v636, %v637
  %v639 = vrot.slane %v638, 2
  %v640 = vadd.f32 %v638, %v639
  %v641 = vrot.slane %v640, 1
  %v642 = vadd.f32 %v640, %v641
  %v643 = vsel %vm378, %v593, 0.0
  %v644 = vrot.slane %v643, 4
  %v645 = vadd.f32 %v643, %v644
  %v646 = vrot.slane %v645, 2
  %v647 = vadd.f32 %v645, %v646
  %v648 = vrot.slane %v647, 1
  %v649 = vadd.f32 %v647, %v648
  %v650 = vpack.c.bf16 %v600, %v600
  %v651 = vpack.c.bf16 %v607, %v607
  %v652 = vpack.c.bf16 %v614, %v614
  %v653 = vpack.c.bf16 %v621, %v621
  %v654 = vpack.c.bf16 %v628, %v628
  %v655 = vpack.c.bf16 %v635, %v635
  %v656 = vpack.c.bf16 %v642, %v642
  %v657 = vpack.c.bf16 %v649, %v649
  %vm658 = vcmask 64512
  %v660 = vsel %vm658, %v650, 0
  %vm662 = vcmask 1043456
  %v663 = vsel %vm662, %v15, 0
  %665 = vmatpush.bf16.msra.mxu0 0
  %666 = vmatpush.bf16.msra.mxu0 0
  %667 = vmatpush.bf16.msra.mxu0 0
  %668 = vmatpush.bf16.msra.mxu0 0
  %669 = vmatpush.bf16.msra.mxu0 0
  %670 = vmatpush.bf16.msra.mxu0 0
  %671 = vmatpush.bf16.msra.mxu0 0
  %672 = vmatpush.bf16.msra.mxu0 %v663
  %673 = vmatmul.bf16.gmra.mxu0 %v660
  %v674 = vpop.f32.mrf.mxu0
  %v675 = vadd.f32 0.0, %v674
  %v676 = vpop.f32.mrf.mxu0
  %677 = vdwg.mxu0
  %v679 = vsel %vm658, %v651, 0
  %v681 = vsel %vm662, %v16, 0
  %683 = vmatpush.bf16.msra.mxu0 0
  %684 = vmatpush.bf16.msra.mxu0 0
  %685 = vmatpush.bf16.msra.mxu0 0
  %686 = vmatpush.bf16.msra.mxu0 0
  %687 = vmatpush.bf16.msra.mxu0 0
  %688 = vmatpush.bf16.msra.mxu0 0
  %689 = vmatpush.bf16.msra.mxu0 0
  %690 = vmatpush.bf16.msra.mxu0 %v681
  %691 = vmatmul.bf16.gmra.mxu0 %v679
  %v692 = vpop.f32.mrf.mxu0
  %v693 = vadd.f32 0.0, %v692
  %v694 = vpop.f32.mrf.mxu0
  %695 = vdwg.mxu0
  %v697 = vsel %vm658, %v652, 0
  %v699 = vsel %vm662, %v17, 0
  %701 = vmatpush.bf16.msra.mxu0 0
  %702 = vmatpush.bf16.msra.mxu0 0
  %703 = vmatpush.bf16.msra.mxu0 0
  %704 = vmatpush.bf16.msra.mxu0 0
  %705 = vmatpush.bf16.msra.mxu0 0
  %706 = vmatpush.bf16.msra.mxu0 0
  %707 = vmatpush.bf16.msra.mxu0 0
  %708 = vmatpush.bf16.msra.mxu0 %v699
  %709 = vmatmul.bf16.gmra.mxu0 %v697
  %v710 = vpop.f32.mrf.mxu0
  %v711 = vadd.f32 0.0, %v710
  %v712 = vpop.f32.mrf.mxu0
  %713 = vdwg.mxu0
  %v715 = vsel %vm658, %v653, 0
  %v717 = vsel %vm662, %v18, 0
  %719 = vmatpush.bf16.msra.mxu0 0
  %720 = vmatpush.bf16.msra.mxu0 0
  %721 = vmatpush.bf16.msra.mxu0 0
  %722 = vmatpush.bf16.msra.mxu0 0
  %723 = vmatpush.bf16.msra.mxu0 0
  %724 = vmatpush.bf16.msra.mxu0 0
  %725 = vmatpush.bf16.msra.mxu0 0
  %726 = vmatpush.bf16.msra.mxu0 %v717
  %727 = vmatmul.bf16.gmra.mxu0 %v715
  %v728 = vpop.f32.mrf.mxu0
  %v729 = vadd.f32 0.0, %v728
  %v730 = vpop.f32.mrf.mxu0
  %731 = vdwg.mxu0
  %v733 = vsel %vm658, %v654, 0
  %v735 = vsel %vm662, %v19, 0
  %737 = vmatpush.bf16.msra.mxu0 0
  %738 = vmatpush.bf16.msra.mxu0 0
  %739 = vmatpush.bf16.msra.mxu0 0
  %740 = vmatpush.bf16.msra.mxu0 0
  %741 = vmatpush.bf16.msra.mxu0 0
  %742 = vmatpush.bf16.msra.mxu0 0
  %743 = vmatpush.bf16.msra.mxu0 0
  %744 = vmatpush.bf16.msra.mxu0 %v735
  %745 = vmatmul.bf16.gmra.mxu0 %v733
  %v746 = vpop.f32.mrf.mxu0
  %v747 = vadd.f32 0.0, %v746
  %v748 = vpop.f32.mrf.mxu0
  %749 = vdwg.mxu0
  %v751 = vsel %vm658, %v655, 0
  %v753 = vsel %vm662, %v20, 0
  %755 = vmatpush.bf16.msra.mxu0 0
  %756 = vmatpush.bf16.msra.mxu0 0
  %757 = vmatpush.bf16.msra.mxu0 0
  %758 = vmatpush.bf16.msra.mxu0 0
  %759 = vmatpush.bf16.msra.mxu0 0
  %760 = vmatpush.bf16.msra.mxu0 0
  %761 = vmatpush.bf16.msra.mxu0 0
  %762 = vmatpush.bf16.msra.mxu0 %v753
  %763 = vmatmul.bf16.gmra.mxu0 %v751
  %v764 = vpop.f32.mrf.mxu0
  %v765 = vadd.f32 0.0, %v764
  %v766 = vpop.f32.mrf.mxu0
  %767 = vdwg.mxu0
  %v769 = vsel %vm658, %v656, 0
  %v771 = vsel %vm662, %v21, 0
  %773 = vmatpush.bf16.msra.mxu0 0
  %774 = vmatpush.bf16.msra.mxu0 0
  %775 = vmatpush.bf16.msra.mxu0 0
  %776 = vmatpush.bf16.msra.mxu0 0
  %777 = vmatpush.bf16.msra.mxu0 0
  %778 = vmatpush.bf16.msra.mxu0 0
  %779 = vmatpush.bf16.msra.mxu0 0
  %780 = vmatpush.bf16.msra.mxu0 %v771
  %781 = vmatmul.bf16.gmra.mxu0 %v769
  %v782 = vpop.f32.mrf.mxu0
  %v783 = vadd.f32 0.0, %v782
  %v784 = vpop.f32.mrf.mxu0
  %785 = vdwg.mxu0
  %v787 = vsel %vm658, %v657, 0
  %v789 = vsel %vm662, %v22, 0
  %791 = vmatpush.bf16.msra.mxu0 0
  %792 = vmatpush.bf16.msra.mxu0 0
  %793 = vmatpush.bf16.msra.mxu0 0
  %794 = vmatpush.bf16.msra.mxu0 0
  %795 = vmatpush.bf16.msra.mxu0 0
  %796 = vmatpush.bf16.msra.mxu0 0
  %797 = vmatpush.bf16.msra.mxu0 0
  %798 = vmatpush.bf16.msra.mxu0 %v789
  %799 = vmatmul.bf16.gmra.mxu0 %v787
  %v800 = vpop.f32.mrf.mxu0
  %v801 = vadd.f32 0.0, %v800
  %v802 = vpop.f32.mrf.mxu0
  %803 = vdwg.mxu0
  %v804 = vld [vmem:[%s1] sm:$0xff]
  %v805 = vld [vmem:[%s1 + $0x8] sm:$0xff]
  %v806 = vld [vmem:[%s1 + $0x10] sm:$0xff]
  %v807 = vld [vmem:[%s1 + $0x18] sm:$0xff]
  %v808 = vld [vmem:[%s2] sm:$0x1]
  %v810 = vperm.slane %v808, 0
  %v820 = vrot.slane %v693, 7
  %vm821 = vcmask 1041409
  %v822 = vsel %vm821, %v820, %v675
  %v823 = vrot.slane %v711, 6
  %vm824 = vcmask 1042434
  %v825 = vsel %vm824, %v823, %v822
  %v826 = vrot.slane %v729, 5
  %vm827 = vcmask 1043459
  %v828 = vsel %vm827, %v826, %v825
  %v829 = vrot.slane %v747, 4
  %vm830 = vcmask 1044484
  %v831 = vsel %vm830, %v829, %v828
  %v832 = vrot.slane %v765, 3
  %vm833 = vcmask 1045509
  %v834 = vsel %vm833, %v832, %v831
  %v835 = vrot.slane %v783, 2
  %vm836 = vcmask 1046534
  %v837 = vsel %vm836, %v835, %v834
  %v838 = vrot.slane %v801, 1
  %vm839 = vcmask 1047559
  %v840 = vsel %vm839, %v838, %v837
  %v841 = vsel %vm32, %v840, 0
  %843 = vmatpush.msra.mxu0 0.0
  %844 = vmatpush.msra.mxu0 0.0
  %845 = vmatpush.msra.mxu0 0.0
  %846 = vmatpush.msra.mxu0 0.0
  %847 = vmatpush.msra.mxu0 0.0
  %848 = vmatpush.msra.mxu0 0.0
  %849 = vmatpush.msra.mxu0 0.0
  %850 = vmatpush.msra.mxu0 0.0
  %851 = vmatpush.msra.mxu0 0.0
  %852 = vmatpush.msra.mxu0 0.0
  %853 = vmatpush.msra.mxu0 0.0
  %854 = vmatpush.msra.mxu0 0.0
  %855 = vmatpush.msra.mxu0 %v807
  %856 = vmatpush.msra.mxu0 %v806
  %857 = vmatpush.msra.mxu0 %v805
  %858 = vmatpush.msra.mxu0 %v804
  %859 = vmatmul.f32.gmra.mxu0 %v841
  %v860 = vpop.f32.mrf.mxu0
  %v861 = vadd.f32 %v810, %v860
  %862 = vdwg.mxu0
  %vm863 = vcmask 23552
  %864 = vst.msk [vmem:[%s3] sm:$0xff] %vm863, %v861
  // Predicated region
  $region14: #{aoa_bert_forward.3} parent=0 // pred_check
    _
  $region15: #{aoa_bert_forward.3} parent=0 // pred_check_branch
    %866 = sbr.rel (0) target = $region17
  $region16: #{aoa_bert_forward.3} parent=0 // pred_region
    _
  $region17: #{aoa_bert_forward.3} parent=0 // pred_fallthru
    _
  // Predicated region
  $region18: #{aoa_bert_forward.3} parent=0 // pred_check
    _
  $region19: #{aoa_bert_forward.3} parent=0 // pred_check_branch
    %868 = sbr.rel (0) target = $region21
  $region20: #{aoa_bert_forward.3} parent=0 // pred_region
    _
  $region21: #{aoa_bert_forward.3} parent=0 // pred_fallthru
    _

</llo_original>
